<compile_context>
chip_gen: v5e
topology: v5e:2x2
jax: 0.10.0
libtpu: 0.0.40
codegen_flags: <defaults>
</compile_context>

<pallas_src>
import functools

import jax
import jax.numpy as jnp
from jax.experimental import pallas as pl
from jax.experimental.pallas import tpu as pltpu


# ---------------------------------------------------------------------------
# Conv GEMM kernel: y = relu(x @ w + b), M-tiled "parallel" grid
# ---------------------------------------------------------------------------
def _gemm_bias_relu_kernel(x_ref, w_ref, b_ref, o_ref):
    y = jnp.dot(x_ref[...], w_ref[...], preferred_element_type=jnp.float32)
    o_ref[...] = jnp.maximum(y + b_ref[...], 0.0)


def gemm_bias_relu(x, w, b, *, tile_m=512):
    """relu(x @ w + b) with rows tiled so DMA overlaps MXU work at scale."""
    M, K = x.shape
    K2, N = w.shape
    assert K == K2 and b.shape == (1, N)
    tm = M if M <= tile_m else tile_m          # tile_m is a multiple of 8
    return pl.pallas_call(
        _gemm_bias_relu_kernel,
        out_shape=jax.ShapeDtypeStruct((M, N), jnp.float32),
        grid=(pl.cdiv(M, tm),),
        in_specs=[
            pl.BlockSpec((tm, K), lambda i: (i, 0)),
            pl.BlockSpec((K, N), lambda i: (0, 0)),
            pl.BlockSpec((1, N), lambda i: (0, 0)),
        ],
        out_specs=pl.BlockSpec((tm, N), lambda i: (i, 0)),
        compiler_params=pltpu.CompilerParams(
            dimension_semantics=("parallel",)),
    )(x, w, b)


# ---------------------------------------------------------------------------
# Fused tail kernel: encoder Linear -> LayerNorm+tanh -> trunk MLP -> head
# ---------------------------------------------------------------------------
def _tail_kernel(*refs, hidden_depth, action_dim, eps,
                 log_std_min, log_std_max):
    it = iter(refs)
    x_ref = next(it)
    enc_w, enc_b, ln_g, ln_b = next(it), next(it), next(it), next(it)
    hidden = [(next(it), next(it)) for _ in range(hidden_depth)]
    head_w, head_b = next(it), next(it)
    mu_ref, std_ref = next(it), next(it)

    # encoder Linear
    h = jnp.dot(x_ref[...], enc_w[...], preferred_element_type=jnp.float32)
    h = h + enc_b[...]
    # LayerNorm (population variance, torch semantics) + tanh
    mean = jnp.mean(h, axis=-1, keepdims=True)
    var = jnp.mean(jnp.square(h - mean), axis=-1, keepdims=True)
    h = (h - mean) * jax.lax.rsqrt(var + eps)
    h = jnp.tanh(h * ln_g[...] + ln_b[...])
    # trunk hidden layers (static unroll over small, fixed depth)
    for w_ref, b_ref in hidden:
        h = jnp.dot(h, w_ref[...], preferred_element_type=jnp.float32)
        h = jnp.maximum(h + b_ref[...], 0.0)
    # fused final Linear producing [mu | log_std] == trunk(...).chunk(2, -1)
    y = jnp.dot(h, head_w[...], preferred_element_type=jnp.float32)
    y = y + head_b[...]
    mu = y[:, :action_dim]
    ls = jnp.tanh(y[:, action_dim:])
    ls = log_std_min + 0.5 * (log_std_max - log_std_min) * (ls + 1.0)
    mu_ref[...] = mu
    std_ref[...] = jnp.exp(ls)


def actor_tail(flat, params, *, log_std_bounds, eps=1e-5):
    """One pallas_call for everything after the conv stack."""
    B = flat.shape[0]
    hidden = params["trunk_hidden"]
    action_dim = params["head_b"].shape[-1] // 2
    lo, hi = log_std_bounds
    args = [flat, params["enc_w"], params["enc_b"],
            params["ln_g"], params["ln_b"]]
    for w, b in hidden:
        args += [w, b]
    args += [params["head_w"], params["head_b"]]
    kernel = functools.partial(
        _tail_kernel, hidden_depth=len(hidden), action_dim=action_dim,
        eps=float(eps), log_std_min=float(lo), log_std_max=float(hi))
    return pl.pallas_call(
        kernel,
        out_shape=(jax.ShapeDtypeStruct((B, action_dim), jnp.float32),
                   jax.ShapeDtypeStruct((B, action_dim), jnp.float32)),
    )(*args)


# ---------------------------------------------------------------------------
# Conv stack: NHWC im2col (XLA glue, static strides) + Pallas GEMMs
# ---------------------------------------------------------------------------
def _im2col_nhwc(x, kh, kw, stride):
    """(B,H,W,C) NHWC -> (B*OH*OW, KH*KW*C); patch ordering (ki, kj, c)."""
    B, H, W, C = x.shape
    OH = (H - kh) // stride + 1
    OW = (W - kw) // stride + 1
    cols = []
    for ki in range(kh):
        for kj in range(kw):
            cols.append(
                x[:, ki:ki + (OH - 1) * stride + 1:stride,
                     kj:kj + (OW - 1) * stride + 1:stride, :])
    patches = jnp.concatenate(cols, axis=-1)          # (B, OH, OW, KH*KW*C)
    return patches.reshape(B * OH * OW, kh * kw * C), OH, OW


def conv_stack(x_nchw, conv_params, strides):
    """4x [3x3 conv + ReLU]; each conv = im2col + Pallas GEMM (bias+ReLU)."""
    x = jnp.transpose(x_nchw, (0, 2, 3, 1))           # NCHW -> NHWC, once
    B = x.shape[0]
    for (w_mat, b), s in zip(conv_params, strides):
        patches, OH, OW = _im2col_nhwc(x, 3, 3, s)
        y = gemm_bias_relu(patches, w_mat, b)         # (B*OH*OW, OC)
        x = y.reshape(B, OH, OW, w_mat.shape[1])
    return x.reshape(B, -1)                           # flatten (h, w, c)


# ---------------------------------------------------------------------------
# Parameter init (synthetic; shapes follow Actor.__init__), kernel-ready layout
# ---------------------------------------------------------------------------
def init_actor_params(key, obs_shape, feature_dim, hidden_dim, hidden_depth,
                      action_dim, n_latents, num_filters=32,
                      strides=(2, 1, 1, 1)):
    """Params already converted to kernel layout:
       - conv weights: torch (OC, C, 3, 3) -> im2col (9*C, OC) with the
         obs/255 normalisation folded into layer 0;
       - biases / LN params stored as (1, N) rows;
       - mu / log_std head weights concatenated into a single (K, 2A) matrix.
       (Importing real torch weights would also require permuting enc_w rows
        from (C,H,W) to (H,W,C) flatten order, since the conv stack is NHWC.)
    """
    C, H, W = obs_shape
    keys = jax.random.split(key, 64)
    ki = iter(range(64))

    def nrm(shape, scale):
        return scale * jax.random.normal(keys[next(ki)], shape, jnp.float32)

    params = {}
    convs = []
    in_c, h, w = C, H, W
    for li, s in enumerate(strides):
        w_t = nrm((num_filters, in_c, 3, 3), 0.1)          # torch layout
        b_t = nrm((num_filters,), 0.01)
        w_mat = jnp.transpose(w_t, (2, 3, 1, 0)).reshape(9 * in_c, num_filters)
        if li == 0:
            w_mat = w_mat / 255.0                          # fold obs/255
        convs.append((w_mat, b_t.reshape(1, num_filters)))
        in_c = num_filters
        h = (h - 3) // s + 1
        w = (w - 3) // s + 1
    params["convs"] = convs
    flat = num_filters * h * w

    params["enc_w"] = nrm((flat, feature_dim), 0.1)
    params["enc_b"] = nrm((1, feature_dim), 0.01)
    params["ln_g"] = jnp.ones((1, feature_dim), jnp.float32)
    params["ln_b"] = jnp.zeros((1, feature_dim), jnp.float32)

    d = feature_dim * n_latents
    hidden = []
    for _ in range(hidden_depth):
        hidden.append((nrm((d, hidden_dim), 0.1), nrm((1, hidden_dim), 0.01)))
        d = hidden_dim
    params["trunk_hidden"] = hidden

    # final trunk Linear producing [mu | log_std] (== chunk(2, dim=-1))
    params["head_w"] = nrm((d, 2 * action_dim), 0.1)
    params["head_b"] = nrm((1, 2 * action_dim), 0.01)
    return params


# ---------------------------------------------------------------------------
# Actor forward
# ---------------------------------------------------------------------------
def actor_forward(params, obs, *, strides, log_std_bounds):
    """Returns (mu, std): parameters of the SquashedNormal policy."""
    flat = conv_stack(obs.astype(jnp.float32), params["convs"], strides)
    return actor_tail(flat, params, log_std_bounds=log_std_bounds)


# ---------------------------------------------------------------------------
if __name__ == "__main__":
    # small, forward-consistent shapes
    B, C, H, W = 2, 4, 16, 16           # NCHW image obs (stacked frames)
    feature_dim = 32
    hidden_dim = 32
    hidden_depth = 2
    action_dim = 6
    n_latents = 1                        # trunk in = feature_dim * n_latents
    log_std_bounds = (-10.0, 2.0)
    conv_strides = (2, 1, 1, 1)          # static conv config (never traced)

    key = jax.random.PRNGKey(0)
    k_obs, k_par = jax.random.split(key)
    obs = jax.random.uniform(k_obs, (B, C, H, W), jnp.float32,
                             minval=0.0, maxval=255.0)
    params = init_actor_params(k_par, (C, H, W), feature_dim, hidden_dim,
                               hidden_depth, action_dim, n_latents,
                               strides=conv_strides)

    fwd = jax.jit(functools.partial(actor_forward, strides=conv_strides,
                                    log_std_bounds=log_std_bounds))
    mu, std = fwd(params, obs)
    jax.block_until_ready((mu, std))

    assert mu.shape == (B, action_dim) and std.shape == (B, action_dim)
    assert bool(jnp.all(jnp.isfinite(mu))) and bool(jnp.all(std > 0))
    print("KERNEL_OK")
</pallas_src>

<mosaic_0001>
module attributes {stable_mosaic.version = 11 : i64} {
  func.func @_gemm_bias_relu_kernel(%arg0: i32, %arg1: memref<98x36xf32, #tpu.memory_space<vmem>>, %arg2: memref<36x32xf32, #tpu.memory_space<vmem>>, %arg3: memref<1x32xf32, #tpu.memory_space<vmem>>, %arg4: memref<98x32xf32, #tpu.memory_space<vmem>>) attributes {dimension_semantics = [#tpu.dimension_semantics<parallel>], iteration_bounds = array<i64: 1>, scalar_prefetch = 0 : i64, scratch_operands = 0 : i64, tpu.core_type = #tpu.core_type<tc>, window_params = [{transform_indices = @transform_0, window_bounds = array<i64: 98, 36>}, {pipeline_mode = #tpu.pipeline_mode<synchronous>, transform_indices = @transform_1, window_bounds = array<i64: 36, 32>}, {pipeline_mode = #tpu.pipeline_mode<synchronous>, transform_indices = @transform_2, window_bounds = array<i64: 1, 32>}, {transform_indices = @transform_3, window_bounds = array<i64: 98, 32>}]} {
    %c0 = arith.constant 0 : index
    %c0_0 = arith.constant 0 : index
    %0 = vector.load %arg1[%c0, %c0_0] : memref<98x36xf32, #tpu.memory_space<vmem>>, vector<98x36xf32>
    %c0_1 = arith.constant 0 : index
    %c0_2 = arith.constant 0 : index
    %1 = vector.load %arg2[%c0_1, %c0_2] : memref<36x32xf32, #tpu.memory_space<vmem>>, vector<36x32xf32>
    %cst = arith.constant dense<0.000000e+00> : vector<98x32xf32>
    %2 = tpu.matmul %0, %1, %cst {dimension_numbers = #tpu.dot_dimension_numbers<[1], [0], [0], [1], [0, 0, 1, 1], [], []>} : vector<98x36xf32>, vector<36x32xf32>, vector<98x32xf32> -> vector<98x32xf32>
    %c0_3 = arith.constant 0 : index
    %c0_4 = arith.constant 0 : index
    %3 = vector.load %arg3[%c0_3, %c0_4] : memref<1x32xf32, #tpu.memory_space<vmem>>, vector<1x32xf32>
    %4 = vector.broadcast %3 : vector<1x32xf32> to vector<98x32xf32>
    %5 = arith.addf %2, %4 : vector<98x32xf32>
    %cst_5 = arith.constant 0.000000e+00 : f32
    %6 = vector.broadcast %cst_5 : f32 to vector<98x32xf32>
    %7 = arith.maximumf %5, %6 : vector<98x32xf32>
    %c0_6 = arith.constant 0 : index
    %c0_7 = arith.constant 0 : index
    %8 = vector.load %arg4[%c0_6, %c0_7] : memref<98x32xf32, #tpu.memory_space<vmem>>, vector<98x32xf32>
    tpu.vector_store %arg4[%c0_6, %c0_7], %7 {strides = array<i32>} : memref<98x32xf32, #tpu.memory_space<vmem>>, vector<98x32xf32>,
    return
  }
  func.func @transform_0(%arg0: i32) -> (i32, i32) {
    %c0_i32 = arith.constant 0 : i32
    %c0_i32_0 = arith.constant 0 : i32
    return %arg0, %c0_i32 : i32, i32
  }
  func.func @transform_1(%arg0: i32) -> (i32, i32) {
    %c0_i32 = arith.constant 0 : i32
    %c0_i32_0 = arith.constant 0 : i32
    %c0_i32_1 = arith.constant 0 : i32
    return %c0_i32, %c0_i32_0 : i32, i32
  }
  func.func @transform_2(%arg0: i32) -> (i32, i32) {
    %c0_i32 = arith.constant 0 : i32
    %c0_i32_0 = arith.constant 0 : i32
    %c0_i32_1 = arith.constant 0 : i32
    return %c0_i32, %c0_i32_0 : i32, i32
  }
  func.func @transform_3(%arg0: i32) -> (i32, i32) {
    %c0_i32 = arith.constant 0 : i32
    %c0_i32_0 = arith.constant 0 : i32
    return %arg0, %c0_i32 : i32, i32
  }
}

module attributes {stable_mosaic.version = 11 : i64} {
  func.func @_gemm_bias_relu_kernel(%arg0: i32, %arg1: memref<50x288xf32, #tpu.memory_space<vmem>>, %arg2: memref<288x32xf32, #tpu.memory_space<vmem>>, %arg3: memref<1x32xf32, #tpu.memory_space<vmem>>, %arg4: memref<50x32xf32, #tpu.memory_space<vmem>>) attributes {dimension_semantics = [#tpu.dimension_semantics<parallel>], iteration_bounds = array<i64: 1>, scalar_prefetch = 0 : i64, scratch_operands = 0 : i64, tpu.core_type = #tpu.core_type<tc>, window_params = [{transform_indices = @transform_0, window_bounds = array<i64: 50, 288>}, {pipeline_mode = #tpu.pipeline_mode<synchronous>, transform_indices = @transform_1, window_bounds = array<i64: 288, 32>}, {pipeline_mode = #tpu.pipeline_mode<synchronous>, transform_indices = @transform_2, window_bounds = array<i64: 1, 32>}, {transform_indices = @transform_3, window_bounds = array<i64: 50, 32>}]} {
    %c0 = arith.constant 0 : index
    %c0_0 = arith.constant 0 : index
    %0 = vector.load %arg1[%c0, %c0_0] : memref<50x288xf32, #tpu.memory_space<vmem>>, vector<50x288xf32>
    %c0_1 = arith.constant 0 : index
    %c0_2 = arith.constant 0 : index
    %1 = vector.load %arg2[%c0_1, %c0_2] : memref<288x32xf32, #tpu.memory_space<vmem>>, vector<288x32xf32>
    %cst = arith.constant dense<0.000000e+00> : vector<50x32xf32>
    %2 = tpu.matmul %0, %1, %cst {dimension_numbers = #tpu.dot_dimension_numbers<[1], [0], [0], [1], [0, 0, 1, 1], [], []>} : vector<50x288xf32>, vector<288x32xf32>, vector<50x32xf32> -> vector<50x32xf32>
    %c0_3 = arith.constant 0 : index
    %c0_4 = arith.constant 0 : index
    %3 = vector.load %arg3[%c0_3, %c0_4] : memref<1x32xf32, #tpu.memory_space<vmem>>, vector<1x32xf32>
    %4 = vector.broadcast %3 : vector<1x32xf32> to vector<50x32xf32>
    %5 = arith.addf %2, %4 : vector<50x32xf32>
    %cst_5 = arith.constant 0.000000e+00 : f32
    %6 = vector.broadcast %cst_5 : f32 to vector<50x32xf32>
    %7 = arith.maximumf %5, %6 : vector<50x32xf32>
    %c0_6 = arith.constant 0 : index
    %c0_7 = arith.constant 0 : index
    %8 = vector.load %arg4[%c0_6, %c0_7] : memref<50x32xf32, #tpu.memory_space<vmem>>, vector<50x32xf32>
    tpu.vector_store %arg4[%c0_6, %c0_7], %7 {strides = array<i32>} : memref<50x32xf32, #tpu.memory_space<vmem>>, vector<50x32xf32>,
    return
  }
  func.func @transform_0(%arg0: i32) -> (i32, i32) {
    %c0_i32 = arith.constant 0 : i32
    %c0_i32_0 = arith.constant 0 : i32
    return %arg0, %c0_i32 : i32, i32
  }
  func.func @transform_1(%arg0: i32) -> (i32, i32) {
    %c0_i32 = arith.constant 0 : i32
    %c0_i32_0 = arith.constant 0 : i32
    %c0_i32_1 = arith.constant 0 : i32
    return %c0_i32, %c0_i32_0 : i32, i32
  }
  func.func @transform_2(%arg0: i32) -> (i32, i32) {
    %c0_i32 = arith.constant 0 : i32
    %c0_i32_0 = arith.constant 0 : i32
    %c0_i32_1 = arith.constant 0 : i32
    return %c0_i32, %c0_i32_0 : i32, i32
  }
  func.func @transform_3(%arg0: i32) -> (i32, i32) {
    %c0_i32 = arith.constant 0 : i32
    %c0_i32_0 = arith.constant 0 : i32
    return %arg0, %c0_i32 : i32, i32
  }
}

module attributes {stable_mosaic.version = 11 : i64} {
  func.func @_gemm_bias_relu_kernel(%arg0: i32, %arg1: memref<18x288xf32, #tpu.memory_space<vmem>>, %arg2: memref<288x32xf32, #tpu.memory_space<vmem>>, %arg3: memref<1x32xf32, #tpu.memory_space<vmem>>, %arg4: memref<18x32xf32, #tpu.memory_space<vmem>>) attributes {dimension_semantics = [#tpu.dimension_semantics<parallel>], iteration_bounds = array<i64: 1>, scalar_prefetch = 0 : i64, scratch_operands = 0 : i64, tpu.core_type = #tpu.core_type<tc>, window_params = [{transform_indices = @transform_0, window_bounds = array<i64: 18, 288>}, {pipeline_mode = #tpu.pipeline_mode<synchronous>, transform_indices = @transform_1, window_bounds = array<i64: 288, 32>}, {pipeline_mode = #tpu.pipeline_mode<synchronous>, transform_indices = @transform_2, window_bounds = array<i64: 1, 32>}, {transform_indices = @transform_3, window_bounds = array<i64: 18, 32>}]} {
    %c0 = arith.constant 0 : index
    %c0_0 = arith.constant 0 : index
    %0 = vector.load %arg1[%c0, %c0_0] : memref<18x288xf32, #tpu.memory_space<vmem>>, vector<18x288xf32>
    %c0_1 = arith.constant 0 : index
    %c0_2 = arith.constant 0 : index
    %1 = vector.load %arg2[%c0_1, %c0_2] : memref<288x32xf32, #tpu.memory_space<vmem>>, vector<288x32xf32>
    %cst = arith.constant dense<0.000000e+00> : vector<18x32xf32>
    %2 = tpu.matmul %0, %1, %cst {dimension_numbers = #tpu.dot_dimension_numbers<[1], [0], [0], [1], [0, 0, 1, 1], [], []>} : vector<18x288xf32>, vector<288x32xf32>, vector<18x32xf32> -> vector<18x32xf32>
    %c0_3 = arith.constant 0 : index
    %c0_4 = arith.constant 0 : index
    %3 = vector.load %arg3[%c0_3, %c0_4] : memref<1x32xf32, #tpu.memory_space<vmem>>, vector<1x32xf32>
    %4 = vector.broadcast %3 : vector<1x32xf32> to vector<18x32xf32>
    %5 = arith.addf %2, %4 : vector<18x32xf32>
    %cst_5 = arith.constant 0.000000e+00 : f32
    %6 = vector.broadcast %cst_5 : f32 to vector<18x32xf32>
    %7 = arith.maximumf %5, %6 : vector<18x32xf32>
    %c0_6 = arith.constant 0 : index
    %c0_7 = arith.constant 0 : index
    %8 = vector.load %arg4[%c0_6, %c0_7] : memref<18x32xf32, #tpu.memory_space<vmem>>, vector<18x32xf32>
    tpu.vector_store %arg4[%c0_6, %c0_7], %7 {strides = array<i32>} : memref<18x32xf32, #tpu.memory_space<vmem>>, vector<18x32xf32>,
    return
  }
  func.func @transform_0(%arg0: i32) -> (i32, i32) {
    %c0_i32 = arith.constant 0 : i32
    %c0_i32_0 = arith.constant 0 : i32
    return %arg0, %c0_i32 : i32, i32
  }
  func.func @transform_1(%arg0: i32) -> (i32, i32) {
    %c0_i32 = arith.constant 0 : i32
    %c0_i32_0 = arith.constant 0 : i32
    %c0_i32_1 = arith.constant 0 : i32
    return %c0_i32, %c0_i32_0 : i32, i32
  }
  func.func @transform_2(%arg0: i32) -> (i32, i32) {
    %c0_i32 = arith.constant 0 : i32
    %c0_i32_0 = arith.constant 0 : i32
    %c0_i32_1 = arith.constant 0 : i32
    return %c0_i32, %c0_i32_0 : i32, i32
  }
  func.func @transform_3(%arg0: i32) -> (i32, i32) {
    %c0_i32 = arith.constant 0 : i32
    %c0_i32_0 = arith.constant 0 : i32
    return %arg0, %c0_i32 : i32, i32
  }
}

module attributes {stable_mosaic.version = 11 : i64} {
  func.func @_gemm_bias_relu_kernel(%arg0: i32, %arg1: memref<2x288xf32, #tpu.memory_space<vmem>>, %arg2: memref<288x32xf32, #tpu.memory_space<vmem>>, %arg3: memref<1x32xf32, #tpu.memory_space<vmem>>, %arg4: memref<2x32xf32, #tpu.memory_space<vmem>>) attributes {dimension_semantics = [#tpu.dimension_semantics<parallel>], iteration_bounds = array<i64: 1>, scalar_prefetch = 0 : i64, scratch_operands = 0 : i64, tpu.core_type = #tpu.core_type<tc>, window_params = [{transform_indices = @transform_0, window_bounds = array<i64: 2, 288>}, {pipeline_mode = #tpu.pipeline_mode<synchronous>, transform_indices = @transform_1, window_bounds = array<i64: 288, 32>}, {pipeline_mode = #tpu.pipeline_mode<synchronous>, transform_indices = @transform_2, window_bounds = array<i64: 1, 32>}, {transform_indices = @transform_3, window_bounds = array<i64: 2, 32>}]} {
    %c0 = arith.constant 0 : index
    %c0_0 = arith.constant 0 : index
    %0 = vector.load %arg1[%c0, %c0_0] : memref<2x288xf32, #tpu.memory_space<vmem>>, vector<2x288xf32>
    %c0_1 = arith.constant 0 : index
    %c0_2 = arith.constant 0 : index
    %1 = vector.load %arg2[%c0_1, %c0_2] : memref<288x32xf32, #tpu.memory_space<vmem>>, vector<288x32xf32>
    %cst = arith.constant dense<0.000000e+00> : vector<2x32xf32>
    %2 = tpu.matmul %0, %1, %cst {dimension_numbers = #tpu.dot_dimension_numbers<[1], [0], [0], [1], [0, 0, 1, 1], [], []>} : vector<2x288xf32>, vector<288x32xf32>, vector<2x32xf32> -> vector<2x32xf32>
    %c0_3 = arith.constant 0 : index
    %c0_4 = arith.constant 0 : index
    %3 = vector.load %arg3[%c0_3, %c0_4] : memref<1x32xf32, #tpu.memory_space<vmem>>, vector<1x32xf32>
    %4 = vector.broadcast %3 : vector<1x32xf32> to vector<2x32xf32>
    %5 = arith.addf %2, %4 : vector<2x32xf32>
    %cst_5 = arith.constant 0.000000e+00 : f32
    %6 = vector.broadcast %cst_5 : f32 to vector<2x32xf32>
    %7 = arith.maximumf %5, %6 : vector<2x32xf32>
    %c0_6 = arith.constant 0 : index
    %c0_7 = arith.constant 0 : index
    %8 = vector.load %arg4[%c0_6, %c0_7] : memref<2x32xf32, #tpu.memory_space<vmem>>, vector<2x32xf32>
    tpu.vector_store %arg4[%c0_6, %c0_7], %7 {strides = array<i32>} : memref<2x32xf32, #tpu.memory_space<vmem>>, vector<2x32xf32>,
    return
  }
  func.func @transform_0(%arg0: i32) -> (i32, i32) {
    %c0_i32 = arith.constant 0 : i32
    %c0_i32_0 = arith.constant 0 : i32
    return %arg0, %c0_i32 : i32, i32
  }
  func.func @transform_1(%arg0: i32) -> (i32, i32) {
    %c0_i32 = arith.constant 0 : i32
    %c0_i32_0 = arith.constant 0 : i32
    %c0_i32_1 = arith.constant 0 : i32
    return %c0_i32, %c0_i32_0 : i32, i32
  }
  func.func @transform_2(%arg0: i32) -> (i32, i32) {
    %c0_i32 = arith.constant 0 : i32
    %c0_i32_0 = arith.constant 0 : i32
    %c0_i32_1 = arith.constant 0 : i32
    return %c0_i32, %c0_i32_0 : i32, i32
  }
  func.func @transform_3(%arg0: i32) -> (i32, i32) {
    %c0_i32 = arith.constant 0 : i32
    %c0_i32_0 = arith.constant 0 : i32
    return %arg0, %c0_i32 : i32, i32
  }
}

module attributes {stable_mosaic.version = 11 : i64} {
  func.func @_tail_kernel(%arg0: memref<2x32xf32, #tpu.memory_space<vmem>>, %arg1: memref<32x32xf32, #tpu.memory_space<vmem>>, %arg2: memref<1x32xf32, #tpu.memory_space<vmem>>, %arg3: memref<1x32xf32, #tpu.memory_space<vmem>>, %arg4: memref<1x32xf32, #tpu.memory_space<vmem>>, %arg5: memref<32x32xf32, #tpu.memory_space<vmem>>, %arg6: memref<1x32xf32, #tpu.memory_space<vmem>>, %arg7: memref<32x32xf32, #tpu.memory_space<vmem>>, %arg8: memref<1x32xf32, #tpu.memory_space<vmem>>, %arg9: memref<32x12xf32, #tpu.memory_space<vmem>>, %arg10: memref<1x12xf32, #tpu.memory_space<vmem>>, %arg11: memref<2x6xf32, #tpu.memory_space<vmem>>, %arg12: memref<2x6xf32, #tpu.memory_space<vmem>>) attributes {dimension_semantics = [], scalar_prefetch = 0 : i64, scratch_operands = 0 : i64, tpu.core_type = #tpu.core_type<tc>} {
    %c0 = arith.constant 0 : index
    %c0_0 = arith.constant 0 : index
    %0 = vector.load %arg0[%c0, %c0_0] : memref<2x32xf32, #tpu.memory_space<vmem>>, vector<2x32xf32>
    %c0_1 = arith.constant 0 : index
    %c0_2 = arith.constant 0 : index
    %1 = vector.load %arg1[%c0_1, %c0_2] : memref<32x32xf32, #tpu.memory_space<vmem>>, vector<32x32xf32>
    %cst = arith.constant dense<0.000000e+00> : vector<2x32xf32>
    %2 = tpu.matmul %0, %1, %cst {dimension_numbers = #tpu.dot_dimension_numbers<[1], [0], [0], [1], [0, 0, 1, 1], [], []>} : vector<2x32xf32>, vector<32x32xf32>, vector<2x32xf32> -> vector<2x32xf32>
    %c0_3 = arith.constant 0 : index
    %c0_4 = arith.constant 0 : index
    %3 = vector.load %arg2[%c0_3, %c0_4] : memref<1x32xf32, #tpu.memory_space<vmem>>, vector<1x32xf32>
    %4 = vector.broadcast %3 : vector<1x32xf32> to vector<2x32xf32>
    %5 = arith.addf %2, %4 : vector<2x32xf32>
    %cst_5 = arith.constant dense<0.000000e+00> : vector<2xf32>
    %6 = vector.multi_reduction <add>, %5, %cst_5 [1] : vector<2x32xf32> to vector<2xf32>
    %7 = vector.shape_cast %6 : vector<2xf32> to vector<2x1xf32>
    %cst_6 = arith.constant 3.200000e+01 : f32
    %8 = vector.broadcast %cst_6 : f32 to vector<2x1xf32>
    %9 = arith.divf %7, %8 : vector<2x1xf32>
    %10 = vector.broadcast %9 : vector<2x1xf32> to vector<2x32xf32>
    %11 = arith.subf %5, %10 : vector<2x32xf32>
    %12 = arith.mulf %11, %11 : vector<2x32xf32>
    %cst_7 = arith.constant dense<0.000000e+00> : vector<2xf32>
    %13 = vector.multi_reduction <add>, %12, %cst_7 [1] : vector<2x32xf32> to vector<2xf32>
    %14 = vector.shape_cast %13 : vector<2xf32> to vector<2x1xf32>
    %cst_8 = arith.constant 3.200000e+01 : f32
    %15 = vector.broadcast %cst_8 : f32 to vector<2x1xf32>
    %16 = arith.divf %14, %15 : vector<2x1xf32>
    %17 = vector.broadcast %9 : vector<2x1xf32> to vector<2x32xf32>
    %18 = arith.subf %5, %17 : vector<2x32xf32>
    %cst_9 = arith.constant 9.99999974E-6 : f32
    %19 = vector.broadcast %cst_9 : f32 to vector<2x1xf32>
    %20 = arith.addf %16, %19 : vector<2x1xf32>
    %21 = math.rsqrt %20 : vector<2x1xf32>
    %22 = vector.broadcast %21 : vector<2x1xf32> to vector<2x32xf32>
    %23 = arith.mulf %18, %22 : vector<2x32xf32>
    %c0_10 = arith.constant 0 : index
    %c0_11 = arith.constant 0 : index
    %24 = vector.load %arg3[%c0_10, %c0_11] : memref<1x32xf32, #tpu.memory_space<vmem>>, vector<1x32xf32>
    %25 = vector.broadcast %24 : vector<1x32xf32> to vector<2x32xf32>
    %26 = arith.mulf %23, %25 : vector<2x32xf32>
    %c0_12 = arith.constant 0 : index
    %c0_13 = arith.constant 0 : index
    %27 = vector.load %arg4[%c0_12, %c0_13] : memref<1x32xf32, #tpu.memory_space<vmem>>, vector<1x32xf32>
    %28 = vector.broadcast %27 : vector<1x32xf32> to vector<2x32xf32>
    %29 = arith.addf %26, %28 : vector<2x32xf32>
    %30 = math.tanh %29 : vector<2x32xf32>
    %c0_14 = arith.constant 0 : index
    %c0_15 = arith.constant 0 : index
    %31 = vector.load %arg5[%c0_14, %c0_15] : memref<32x32xf32, #tpu.memory_space<vmem>>, vector<32x32xf32>
    %cst_16 = arith.constant dense<0.000000e+00> : vector<2x32xf32>
    %32 = tpu.matmul %30, %31, %cst_16 {dimension_numbers = #tpu.dot_dimension_numbers<[1], [0], [0], [1], [0, 0, 1, 1], [], []>} : vector<2x32xf32>, vector<32x32xf32>, vector<2x32xf32> -> vector<2x32xf32>
    %c0_17 = arith.constant 0 : index
    %c0_18 = arith.constant 0 : index
    %33 = vector.load %arg6[%c0_17, %c0_18] : memref<1x32xf32, #tpu.memory_space<vmem>>, vector<1x32xf32>
    %34 = vector.broadcast %33 : vector<1x32xf32> to vector<2x32xf32>
    %35 = arith.addf %32, %34 : vector<2x32xf32>
    %cst_19 = arith.constant 0.000000e+00 : f32
    %36 = vector.broadcast %cst_19 : f32 to vector<2x32xf32>
    %37 = arith.maximumf %35, %36 : vector<2x32xf32>
    %c0_20 = arith.constant 0 : index
    %c0_21 = arith.constant 0 : index
    %38 = vector.load %arg7[%c0_20, %c0_21] : memref<32x32xf32, #tpu.memory_space<vmem>>, vector<32x32xf32>
    %cst_22 = arith.constant dense<0.000000e+00> : vector<2x32xf32>
    %39 = tpu.matmul %37, %38, %cst_22 {dimension_numbers = #tpu.dot_dimension_numbers<[1], [0], [0], [1], [0, 0, 1, 1], [], []>} : vector<2x32xf32>, vector<32x32xf32>, vector<2x32xf32> -> vector<2x32xf32>
    %c0_23 = arith.constant 0 : index
    %c0_24 = arith.constant 0 : index
    %40 = vector.load %arg8[%c0_23, %c0_24] : memref<1x32xf32, #tpu.memory_space<vmem>>, vector<1x32xf32>
    %41 = vector.broadcast %40 : vector<1x32xf32> to vector<2x32xf32>
    %42 = arith.addf %39, %41 : vector<2x32xf32>
    %cst_25 = arith.constant 0.000000e+00 : f32
    %43 = vector.broadcast %cst_25 : f32 to vector<2x32xf32>
    %44 = arith.maximumf %42, %43 : vector<2x32xf32>
    %c0_26 = arith.constant 0 : index
    %c0_27 = arith.constant 0 : index
    %45 = vector.load %arg9[%c0_26, %c0_27] : memref<32x12xf32, #tpu.memory_space<vmem>>, vector<32x12xf32>
    %cst_28 = arith.constant dense<0.000000e+00> : vector<2x12xf32>
    %46 = tpu.matmul %44, %45, %cst_28 {dimension_numbers = #tpu.dot_dimension_numbers<[1], [0], [0], [1], [0, 0, 1, 1], [], []>} : vector<2x32xf32>, vector<32x12xf32>, vector<2x12xf32> -> vector<2x12xf32>
    %c0_29 = arith.constant 0 : index
    %c0_30 = arith.constant 0 : index
    %47 = vector.load %arg10[%c0_29, %c0_30] : memref<1x12xf32, #tpu.memory_space<vmem>>, vector<1x12xf32>
    %48 = vector.broadcast %47 : vector<1x12xf32> to vector<2x12xf32>
    %49 = arith.addf %46, %48 : vector<2x12xf32>
    %50 = vector.extract_strided_slice %49 {offsets = [0, 0], sizes = [2, 6], strides = [1, 1]} : vector<2x12xf32> to vector<2x6xf32>
    %51 = vector.extract_strided_slice %49 {offsets = [0, 6], sizes = [2, 6], strides = [1, 1]} : vector<2x12xf32> to vector<2x6xf32>
    %52 = math.tanh %51 : vector<2x6xf32>
    %cst_31 = arith.constant 1.000000e+00 : f32
    %53 = vector.broadcast %cst_31 : f32 to vector<2x6xf32>
    %54 = arith.addf %52, %53 : vector<2x6xf32>
    %cst_32 = arith.constant 6.000000e+00 : f32
    %55 = vector.broadcast %cst_32 : f32 to vector<2x6xf32>
    %56 = arith.mulf %55, %54 : vector<2x6xf32>
    %cst_33 = arith.constant -1.000000e+01 : f32
    %57 = vector.broadcast %cst_33 : f32 to vector<2x6xf32>
    %58 = arith.addf %57, %56 : vector<2x6xf32>
    %c0_34 = arith.constant 0 : index
    %c0_35 = arith.constant 0 : index
    %59 = vector.load %arg11[%c0_34, %c0_35] : memref<2x6xf32, #tpu.memory_space<vmem>>, vector<2x6xf32>
    tpu.vector_store %arg11[%c0_34, %c0_35], %50 {strides = array<i32>} : memref<2x6xf32, #tpu.memory_space<vmem>>, vector<2x6xf32>,
    %60 = math.exp %58 : vector<2x6xf32>
    %c0_36 = arith.constant 0 : index
    %c0_37 = arith.constant 0 : index
    %61 = vector.load %arg12[%c0_36, %c0_37] : memref<2x6xf32, #tpu.memory_space<vmem>>, vector<2x6xf32>
    tpu.vector_store %arg12[%c0_36, %c0_37], %60 {strides = array<i32>} : memref<2x6xf32, #tpu.memory_space<vmem>>, vector<2x6xf32>,
    return
  }
}

</mosaic_0001>

<llo_original>
// kernel: actor_forward.5
$region0: #{actor_forward.5}
  #allocation0 [shape = 'u32[]', space=smem, size = 0x4, offset = 0x4, fixed_abs, tag = 'smem constant byte address 0x4 - core index']
  #allocation1 [shape = 'u32[72,128]{1,0:T(1,128)}', space=vmem, size = 0x9000, scoped, tag = 'internal scratch']
  %s0 = inlined_call_operand.vmem [shape: f32[98,36], index: 0, kind: input, shape index: {}]
  %s1 = inlined_call_operand.vmem [shape: f32[36,32], index: 1, kind: input, shape index: {}]
  %s2 = inlined_call_operand.vmem [shape: f32[1,32], index: 2, kind: input, shape index: {}]
  %s3 = inlined_call_operand.vmem [shape: f32[98,32], index: 3, kind: output, shape index: {}]
  %s4 = sld [smem:[#allocation0]]
  $region22: #{actor_forward.5} parent=0
    _
  %s6 = ssub.s32 1, %s4
  %s7 = scalar_select 0, %s6, %s4
  // Predicated region
  $region2: #{actor_forward.5} parent=0 // pred_check
    _
  $region3: #{actor_forward.5} parent=0 // pred_check_branch
    %9 = sbr.rel (0) target = $region5
  $region4: #{actor_forward.5} parent=0 // pred_region
    _
  $region5: #{actor_forward.5} parent=0 // pred_fallthru
    _
  // Predicated region
  $region6: #{actor_forward.5} parent=0 // pred_check
    _
  $region7: #{actor_forward.5} parent=0 // pred_check_branch
    %11 = sbr.rel (0) target = $region9
  $region8: #{actor_forward.5} parent=0 // pred_region
    _
  $region9: #{actor_forward.5} parent=0 // pred_fallthru
    _
  // Predicated region
  $region10: #{actor_forward.5} parent=0 // pred_check
    _
  $region11: #{actor_forward.5} parent=0 // pred_check_branch
    %13 = sbr.rel (0) target = $region13
  $region12: #{actor_forward.5} parent=0 // pred_region
    _
  $region13: #{actor_forward.5} parent=0 // pred_fallthru
    _
  %v14 = vld [vmem:[%s0] sm:$0xff]
  %v15 = vld [vmem:[%s0 + $0x8] sm:$0xff]
  %v16 = vld [vmem:[%s0 + $0x10] sm:$0xff]
  %v17 = vld [vmem:[%s0 + $0x18] sm:$0xff]
  %v18 = vld [vmem:[%s0 + $0x20] sm:$0xff]
  %v19 = vld [vmem:[%s0 + $0x28] sm:$0xff]
  %v20 = vld [vmem:[%s0 + $0x30] sm:$0xff]
  %v21 = vld [vmem:[%s0 + $0x38] sm:$0xff]
  %v22 = vld [vmem:[%s0 + $0x40] sm:$0xff]
  %v23 = vld [vmem:[%s0 + $0x48] sm:$0xff]
  %v24 = vld [vmem:[%s0 + $0x50] sm:$0xff]
  %v25 = vld [vmem:[%s0 + $0x58] sm:$0xff]
  %v26 = vld [vmem:[%s0 + $0x60] sm:$0x3]
  %v27 = vld [vmem:[%s1] sm:$0xff]
  %v28 = vld [vmem:[%s1 + $0x8] sm:$0xff]
  %v29 = vld [vmem:[%s1 + $0x10] sm:$0xff]
  %v30 = vld [vmem:[%s1 + $0x18] sm:$0xff]
  %v31 = vld [vmem:[%s1 + $0x20] sm:$0xf]
  %v32 = vld [vmem:[%s2] sm:$0x1]
  %v34 = vperm.slane %v32, 0
  %vm36 = vcmask 293888
  %v38 = vsel %vm36, %v14, 0
  %v41 = vsel %vm36, %v15, 0
  %v44 = vsel %vm36, %v16, 0
  %v47 = vsel %vm36, %v17, 0
  %v50 = vsel %vm36, %v18, 0
  %v53 = vsel %vm36, %v19, 0
  %v56 = vsel %vm36, %v20, 0
  %v59 = vsel %vm36, %v21, 0
  %v62 = vsel %vm36, %v22, 0
  %v65 = vsel %vm36, %v23, 0
  %v68 = vsel %vm36, %v24, 0
  %v71 = vsel %vm36, %v25, 0
  %v74 = vsel %vm36, %v26, 0
  %vm76 = vcmask 1043456
  %v78 = vsel %vm76, %v31, 0
  %80 = vmatpush.msra.mxu0 0.0
  %81 = vmatpush.msra.mxu0 0.0
  %82 = vmatpush.msra.mxu0 0.0
  %83 = vmatpush.msra.mxu0 0.0
  %84 = vmatpush.msra.mxu0 0.0
  %85 = vmatpush.msra.mxu0 0.0
  %86 = vmatpush.msra.mxu0 0.0
  %87 = vmatpush.msra.mxu0 0.0
  %88 = vmatpush.msra.mxu0 0.0
  %89 = vmatpush.msra.mxu0 0.0
  %90 = vmatpush.msra.mxu0 0.0
  %91 = vmatpush.msra.mxu0 %v78
  %92 = vmatpush.msra.mxu0 %v30
  %93 = vmatpush.msra.mxu0 %v29
  %94 = vmatpush.msra.mxu0 %v28
  %95 = vmatpush.msra.mxu0 %v27
  %96 = vmatmul.f32.gmra.mxu0 %v38
  %v97 = vpop.f32.mrf.mxu0
  %v98 = vadd.f32 %v34, %v97
  %99 = vmatmul.f32.gmra.mxu0 %v41
  %v100 = vpop.f32.mrf.mxu0
  %v101 = vadd.f32 %v34, %v100
  %102 = vmatmul.f32.gmra.mxu0 %v44
  %v103 = vpop.f32.mrf.mxu0
  %v104 = vadd.f32 %v34, %v103
  %105 = vmatmul.f32.gmra.mxu0 %v47
  %v106 = vpop.f32.mrf.mxu0
  %v107 = vadd.f32 %v34, %v106
  %108 = vmatmul.f32.gmra.mxu0 %v50
  %v109 = vpop.f32.mrf.mxu0
  %v110 = vadd.f32 %v34, %v109
  %111 = vmatmul.f32.gmra.mxu0 %v53
  %v112 = vpop.f32.mrf.mxu0
  %v113 = vadd.f32 %v34, %v112
  %114 = vmatmul.f32.gmra.mxu0 %v56
  %v115 = vpop.f32.mrf.mxu0
  %v116 = vadd.f32 %v34, %v115
  %117 = vmatmul.f32.gmra.mxu0 %v59
  %v118 = vpop.f32.mrf.mxu0
  %v119 = vadd.f32 %v34, %v118
  %120 = vmatmul.f32.gmra.mxu0 %v62
  %v121 = vpop.f32.mrf.mxu0
  %v122 = vadd.f32 %v34, %v121
  %123 = vmatmul.f32.gmra.mxu0 %v65
  %v124 = vpop.f32.mrf.mxu0
  %v125 = vadd.f32 %v34, %v124
  %126 = vmatmul.f32.gmra.mxu0 %v68
  %v127 = vpop.f32.mrf.mxu0
  %v128 = vadd.f32 %v34, %v127
  %129 = vmatmul.f32.gmra.mxu0 %v71
  %v130 = vpop.f32.mrf.mxu0
  %v131 = vadd.f32 %v34, %v130
  %132 = vmatmul.f32.gmra.mxu0 %v74
  %v133 = vpop.f32.mrf.mxu0
  %v134 = vadd.f32 %v34, %v133
  %135 = vdwg.mxu0
  %v136 = vmax.f32 %v98, 0.0
  %v137 = vmax.f32 %v101, 0.0
  %v138 = vmax.f32 %v104, 0.0
  %v139 = vmax.f32 %v107, 0.0
  %v140 = vmax.f32 %v110, 0.0
  %v141 = vmax.f32 %v113, 0.0
  %v142 = vmax.f32 %v116, 0.0
  %v143 = vmax.f32 %v119, 0.0
  %v144 = vmax.f32 %v122, 0.0
  %v145 = vmax.f32 %v125, 0.0
  %v146 = vmax.f32 %v128, 0.0
  %v147 = vmax.f32 %v131, 0.0
  %v148 = vmax.f32 %v134, 0.0
  %vm149 = vcmask 261120
  %150 = vst.msk [vmem:[%s3] sm:$0xff] %vm149, %v136
  %151 = vst.msk [vmem:[%s3 + $0x8] sm:$0xff] %vm149, %v137
  %152 = vst.msk [vmem:[%s3 + $0x10] sm:$0xff] %vm149, %v138
  %153 = vst.msk [vmem:[%s3 + $0x18] sm:$0xff] %vm149, %v139
  %154 = vst.msk [vmem:[%s3 + $0x20] sm:$0xff] %vm149, %v140
  %155 = vst.msk [vmem:[%s3 + $0x28] sm:$0xff] %vm149, %v141
  %156 = vst.msk [vmem:[%s3 + $0x30] sm:$0xff] %vm149, %v142
  %157 = vst.msk [vmem:[%s3 + $0x38] sm:$0xff] %vm149, %v143
  %158 = vst.msk [vmem:[%s3 + $0x40] sm:$0xff] %vm149, %v144
  %159 = vst.msk [vmem:[%s3 + $0x48] sm:$0xff] %vm149, %v145
  %160 = vst.msk [vmem:[%s3 + $0x50] sm:$0xff] %vm149, %v146
  %161 = vst.msk [vmem:[%s3 + $0x58] sm:$0xff] %vm149, %v147
  %vm162 = vcmask 254976
  %163 = vst.msk [vmem:[%s3 + $0x60] sm:$0x3] %vm162, %v148
  // Predicated region
  $region14: #{actor_forward.5} parent=0 // pred_check
    _
  $region15: #{actor_forward.5} parent=0 // pred_check_branch
    %165 = sbr.rel (0) target = $region17
  $region16: #{actor_forward.5} parent=0 // pred_region
    _
  $region17: #{actor_forward.5} parent=0 // pred_fallthru
    _
  // Predicated region
  $region18: #{actor_forward.5} parent=0 // pred_check
    _
  $region19: #{actor_forward.5} parent=0 // pred_check_branch
    %167 = sbr.rel (0) target = $region21
  $region20: #{actor_forward.5} parent=0 // pred_region
    _
  $region21: #{actor_forward.5} parent=0 // pred_fallthru
    _

// kernel: actor_forward.6
$region0: #{actor_forward.6}
  #allocation0 [shape = 'u32[]', space=smem, size = 0x4, offset = 0x4, fixed_abs, tag = 'smem constant byte address 0x4 - core index']
  #allocation1 [shape = 'u32[72,128]{1,0:T(1,128)}', space=vmem, size = 0x9000, scoped, tag = 'internal scratch']
  %s0 = inlined_call_operand.vmem [shape: f32[50,288], index: 0, kind: input, shape index: {}]
  %s1 = inlined_call_operand.vmem [shape: f32[288,32], index: 1, kind: input, shape index: {}]
  %s2 = inlined_call_operand.vmem [shape: f32[1,32], index: 2, kind: input, shape index: {}]
  %s3 = inlined_call_operand.vmem [shape: f32[50,32], index: 3, kind: output, shape index: {}]
  %s4 = sld [smem:[#allocation0]]
  $region22: #{actor_forward.6} parent=0
    _
  %s6 = ssub.s32 1, %s4
  %s7 = scalar_select 0, %s6, %s4
  // Predicated region
  $region2: #{actor_forward.6} parent=0 // pred_check
    _
  $region3: #{actor_forward.6} parent=0 // pred_check_branch
    %9 = sbr.rel (0) target = $region5
  $region4: #{actor_forward.6} parent=0 // pred_region
    _
  $region5: #{actor_forward.6} parent=0 // pred_fallthru
    _
  // Predicated region
  $region6: #{actor_forward.6} parent=0 // pred_check
    _
  $region7: #{actor_forward.6} parent=0 // pred_check_branch
    %11 = sbr.rel (0) target = $region9
  $region8: #{actor_forward.6} parent=0 // pred_region
    _
  $region9: #{actor_forward.6} parent=0 // pred_fallthru
    _
  // Predicated region
  $region10: #{actor_forward.6} parent=0 // pred_check
    _
  $region11: #{actor_forward.6} parent=0 // pred_check_branch
    %13 = sbr.rel (0) target = $region13
  $region12: #{actor_forward.6} parent=0 // pred_region
    _
  $region13: #{actor_forward.6} parent=0 // pred_fallthru
    _
  %v14 = vld [vmem:[%s0] sm:$0xff]
  %v15 = vld [vmem:[%s0 + $0x8] sm:$0xff]
  %v16 = vld [vmem:[%s0 + $0x10] sm:$0xff]
  %v17 = vld [vmem:[%s0 + $0x18] sm:$0xff]
  %v18 = vld [vmem:[%s0 + $0x20] sm:$0xff]
  %v19 = vld [vmem:[%s0 + $0x28] sm:$0xff]
  %v20 = vld [vmem:[%s0 + $0x30] sm:$0xff]
  %v21 = vld [vmem:[%s0 + $0x38] sm:$0xff]
  %v22 = vld [vmem:[%s0 + $0x40] sm:$0xff]
  %v23 = vld [vmem:[%s0 + $0x48] sm:$0xff]
  %v24 = vld [vmem:[%s0 + $0x50] sm:$0xff]
  %v25 = vld [vmem:[%s0 + $0x58] sm:$0xff]
  %v26 = vld [vmem:[%s0 + $0x60] sm:$0xff]
  %v27 = vld [vmem:[%s0 + $0x68] sm:$0xff]
  %v28 = vld [vmem:[%s0 + $0x70] sm:$0xff]
  %v29 = vld [vmem:[%s0 + $0x78] sm:$0xff]
  %v30 = vld [vmem:[%s0 + $0x80] sm:$0xff]
  %v31 = vld [vmem:[%s0 + $0x88] sm:$0xff]
  %v32 = vld [vmem:[%s0 + $0x90] sm:$0x3]
  %v33 = vld [vmem:[%s0 + $0x98] sm:$0x3]
  %v34 = vld [vmem:[%s0 + $0xa0] sm:$0x3]
  %v35 = vld [vmem:[%s1] sm:$0xff]
  %v36 = vld [vmem:[%s1 + $0x8] sm:$0xff]
  %v37 = vld [vmem:[%s1 + $0x10] sm:$0xff]
  %v38 = vld [vmem:[%s1 + $0x18] sm:$0xff]
  %v39 = vld [vmem:[%s1 + $0x20] sm:$0xff]
  %v40 = vld [vmem:[%s1 + $0x28] sm:$0xff]
  %v41 = vld [vmem:[%s1 + $0x30] sm:$0xff]
  %v42 = vld [vmem:[%s1 + $0x38] sm:$0xff]
  %v43 = vld [vmem:[%s1 + $0x40] sm:$0xff]
  %v44 = vld [vmem:[%s1 + $0x48] sm:$0xff]
  %v45 = vld [vmem:[%s1 + $0x50] sm:$0xff]
  %v46 = vld [vmem:[%s1 + $0x58] sm:$0xff]
  %v47 = vld [vmem:[%s1 + $0x60] sm:$0xff]
  %v48 = vld [vmem:[%s1 + $0x68] sm:$0xff]
  %v49 = vld [vmem:[%s1 + $0x70] sm:$0xff]
  %v50 = vld [vmem:[%s1 + $0x78] sm:$0xff]
  %v51 = vld [vmem:[%s1 + $0x80] sm:$0xff]
  %v52 = vld [vmem:[%s1 + $0x88] sm:$0xff]
  %v53 = vld [vmem:[%s1 + $0x90] sm:$0xff]
  %v54 = vld [vmem:[%s1 + $0x98] sm:$0xff]
  %v55 = vld [vmem:[%s1 + $0xa0] sm:$0xff]
  %v56 = vld [vmem:[%s1 + $0xa8] sm:$0xff]
  %v57 = vld [vmem:[%s1 + $0xb0] sm:$0xff]
  %v58 = vld [vmem:[%s1 + $0xb8] sm:$0xff]
  %v59 = vld [vmem:[%s1 + $0xc0] sm:$0xff]
  %v60 = vld [vmem:[%s1 + $0xc8] sm:$0xff]
  %v61 = vld [vmem:[%s1 + $0xd0] sm:$0xff]
  %v62 = vld [vmem:[%s1 + $0xd8] sm:$0xff]
  %v63 = vld [vmem:[%s1 + $0xe0] sm:$0xff]
  %v64 = vld [vmem:[%s1 + $0xe8] sm:$0xff]
  %v65 = vld [vmem:[%s1 + $0xf0] sm:$0xff]
  %v66 = vld [vmem:[%s1 + $0xf8] sm:$0xff]
  %v67 = vld [vmem:[%s1 + $0x100] sm:$0xff]
  %v68 = vld [vmem:[%s1 + $0x108] sm:$0xff]
  %v69 = vld [vmem:[%s1 + $0x110] sm:$0xff]
  %v70 = vld [vmem:[%s1 + $0x118] sm:$0xff]
  %v71 = vld [vmem:[%s2] sm:$0x1]
  %v73 = vperm.slane %v71, 0
  %vm75 = vcmask 261120
  %v77 = vsel %vm75, %v16, 0
  %v80 = vsel %vm75, %v19, 0
  %v83 = vsel %vm75, %v22, 0
  %v86 = vsel %vm75, %v25, 0
  %v89 = vsel %vm75, %v28, 0
  %v92 = vsel %vm75, %v31, 0
  %v95 = vsel %vm75, %v34, 0
  %97 = vmatpush.msra.mxu0 %v50
  %98 = vmatpush.msra.mxu0 %v49
  %99 = vmatpush.msra.mxu0 %v48
  %100 = vmatpush.msra.mxu0 %v47
  %101 = vmatpush.msra.mxu0 %v46
  %102 = vmatpush.msra.mxu0 %v45
  %103 = vmatpush.msra.mxu0 %v44
  %104 = vmatpush.msra.mxu0 %v43
  %105 = vmatpush.msra.mxu0 %v42
  %106 = vmatpush.msra.mxu0 %v41
  %107 = vmatpush.msra.mxu0 %v40
  %108 = vmatpush.msra.mxu0 %v39
  %109 = vmatpush.msra.mxu0 %v38
  %110 = vmatpush.msra.mxu0 %v37
  %111 = vmatpush.msra.mxu0 %v36
  %112 = vmatpush.msra.mxu0 %v35
  %113 = vmatmul.f32.gmra.mxu0 %v14
  %v114 = vpop.f32.mrf.mxu0
  %v115 = vadd.f32 %v73, %v114
  %116 = vmatmul.f32.gmra.mxu0 %v17
  %v117 = vpop.f32.mrf.mxu0
  %v118 = vadd.f32 %v73, %v117
  %119 = vmatmul.f32.gmra.mxu0 %v20
  %v120 = vpop.f32.mrf.mxu0
  %v121 = vadd.f32 %v73, %v120
  %122 = vmatmul.f32.gmra.mxu0 %v23
  %v123 = vpop.f32.mrf.mxu0
  %v124 = vadd.f32 %v73, %v123
  %125 = vmatmul.f32.gmra.mxu0 %v26
  %v126 = vpop.f32.mrf.mxu0
  %v127 = vadd.f32 %v73, %v126
  %128 = vmatmul.f32.gmra.mxu0 %v29
  %v129 = vpop.f32.mrf.mxu0
  %v130 = vadd.f32 %v73, %v129
  %131 = vmatmul.f32.gmra.mxu0 %v32
  %v132 = vpop.f32.mrf.mxu0
  %v133 = vadd.f32 %v73, %v132
  %134 = vdwg.mxu0
  %135 = vmatpush.msra.mxu0 %v66
  %136 = vmatpush.msra.mxu0 %v65
  %137 = vmatpush.msra.mxu0 %v64
  %138 = vmatpush.msra.mxu0 %v63
  %139 = vmatpush.msra.mxu0 %v62
  %140 = vmatpush.msra.mxu0 %v61
  %141 = vmatpush.msra.mxu0 %v60
  %142 = vmatpush.msra.mxu0 %v59
  %143 = vmatpush.msra.mxu0 %v58
  %144 = vmatpush.msra.mxu0 %v57
  %145 = vmatpush.msra.mxu0 %v56
  %146 = vmatpush.msra.mxu0 %v55
  %147 = vmatpush.msra.mxu0 %v54
  %148 = vmatpush.msra.mxu0 %v53
  %149 = vmatpush.msra.mxu0 %v52
  %150 = vmatpush.msra.mxu0 %v51
  %151 = vmatmul.f32.gmra.mxu0 %v15
  %v152 = vpop.f32.mrf.mxu0
  %v153 = vadd.f32 %v115, %v152
  %154 = vmatmul.f32.gmra.mxu0 %v18
  %v155 = vpop.f32.mrf.mxu0
  %v156 = vadd.f32 %v118, %v155
  %157 = vmatmul.f32.gmra.mxu0 %v21
  %v158 = vpop.f32.mrf.mxu0
  %v159 = vadd.f32 %v121, %v158
  %160 = vmatmul.f32.gmra.mxu0 %v24
  %v161 = vpop.f32.mrf.mxu0
  %v162 = vadd.f32 %v124, %v161
  %163 = vmatmul.f32.gmra.mxu0 %v27
  %v164 = vpop.f32.mrf.mxu0
  %v165 = vadd.f32 %v127, %v164
  %166 = vmatmul.f32.gmra.mxu0 %v30
  %v167 = vpop.f32.mrf.mxu0
  %v168 = vadd.f32 %v130, %v167
  %169 = vmatmul.f32.gmra.mxu0 %v33
  %v170 = vpop.f32.mrf.mxu0
  %v171 = vadd.f32 %v133, %v170
  %172 = vdwg.mxu0
  %173 = vmatpush.msra.mxu0 0.0
  %174 = vmatpush.msra.mxu0 0.0
  %175 = vmatpush.msra.mxu0 0.0
  %176 = vmatpush.msra.mxu0 0.0
  %177 = vmatpush.msra.mxu0 0.0
  %178 = vmatpush.msra.mxu0 0.0
  %179 = vmatpush.msra.mxu0 0.0
  %180 = vmatpush.msra.mxu0 0.0
  %181 = vmatpush.msra.mxu0 0.0
  %182 = vmatpush.msra.mxu0 0.0
  %183 = vmatpush.msra.mxu0 0.0
  %184 = vmatpush.msra.mxu0 0.0
  %185 = vmatpush.msra.mxu0 %v70
  %186 = vmatpush.msra.mxu0 %v69
  %187 = vmatpush.msra.mxu0 %v68
  %188 = vmatpush.msra.mxu0 %v67
  %189 = vmatmul.f32.gmra.mxu0 %v77
  %v190 = vpop.f32.mrf.mxu0
  %v191 = vadd.f32 %v153, %v190
  %192 = vmatmul.f32.gmra.mxu0 %v80
  %v193 = vpop.f32.mrf.mxu0
  %v194 = vadd.f32 %v156, %v193
  %195 = vmatmul.f32.gmra.mxu0 %v83
  %v196 = vpop.f32.mrf.mxu0
  %v197 = vadd.f32 %v159, %v196
  %198 = vmatmul.f32.gmra.mxu0 %v86
  %v199 = vpop.f32.mrf.mxu0
  %v200 = vadd.f32 %v162, %v199
  %201 = vmatmul.f32.gmra.mxu0 %v89
  %v202 = vpop.f32.mrf.mxu0
  %v203 = vadd.f32 %v165, %v202
  %204 = vmatmul.f32.gmra.mxu0 %v92
  %v205 = vpop.f32.mrf.mxu0
  %v206 = vadd.f32 %v168, %v205
  %207 = vmatmul.f32.gmra.mxu0 %v95
  %v208 = vpop.f32.mrf.mxu0
  %v209 = vadd.f32 %v171, %v208
  %210 = vdwg.mxu0
  %v211 = vmax.f32 %v191, 0.0
  %v212 = vmax.f32 %v194, 0.0
  %v213 = vmax.f32 %v197, 0.0
  %v214 = vmax.f32 %v200, 0.0
  %v215 = vmax.f32 %v203, 0.0
  %v216 = vmax.f32 %v206, 0.0
  %v217 = vmax.f32 %v209, 0.0
  %218 = vst.msk [vmem:[%s3] sm:$0xff] %vm75, %v211
  %219 = vst.msk [vmem:[%s3 + $0x8] sm:$0xff] %vm75, %v212
  %220 = vst.msk [vmem:[%s3 + $0x10] sm:$0xff] %vm75, %v213
  %221 = vst.msk [vmem:[%s3 + $0x18] sm:$0xff] %vm75, %v214
  %222 = vst.msk [vmem:[%s3 + $0x20] sm:$0xff] %vm75, %v215
  %223 = vst.msk [vmem:[%s3 + $0x28] sm:$0xff] %vm75, %v216
  %vm224 = vcmask 254976
  %225 = vst.msk [vmem:[%s3 + $0x30] sm:$0x3] %vm224, %v217
  // Predicated region
  $region14: #{actor_forward.6} parent=0 // pred_check
    _
  $region15: #{actor_forward.6} parent=0 // pred_check_branch
    %227 = sbr.rel (0) target = $region17
  $region16: #{actor_forward.6} parent=0 // pred_region
    _
  $region17: #{actor_forward.6} parent=0 // pred_fallthru
    _
  // Predicated region
  $region18: #{actor_forward.6} parent=0 // pred_check
    _
  $region19: #{actor_forward.6} parent=0 // pred_check_branch
    %229 = sbr.rel (0) target = $region21
  $region20: #{actor_forward.6} parent=0 // pred_region
    _
  $region21: #{actor_forward.6} parent=0 // pred_fallthru
    _

// kernel: actor_forward.7
$region0: #{actor_forward.7}
  #allocation0 [shape = 'u32[]', space=smem, size = 0x4, offset = 0x4, fixed_abs, tag = 'smem constant byte address 0x4 - core index']
  #allocation1 [shape = 'u32[72,128]{1,0:T(1,128)}', space=vmem, size = 0x9000, scoped, tag = 'internal scratch']
  %s0 = inlined_call_operand.vmem [shape: f32[18,288], index: 0, kind: input, shape index: {}]
  %s1 = inlined_call_operand.vmem [shape: f32[288,32], index: 1, kind: input, shape index: {}]
  %s2 = inlined_call_operand.vmem [shape: f32[1,32], index: 2, kind: input, shape index: {}]
  %s3 = inlined_call_operand.vmem [shape: f32[18,32], index: 3, kind: output, shape index: {}]
  %s4 = sld [smem:[#allocation0]]
  $region22: #{actor_forward.7} parent=0
    _
  %s6 = ssub.s32 1, %s4
  %s7 = scalar_select 0, %s6, %s4
  // Predicated region
  $region2: #{actor_forward.7} parent=0 // pred_check
    _
  $region3: #{actor_forward.7} parent=0 // pred_check_branch
    %9 = sbr.rel (0) target = $region5
  $region4: #{actor_forward.7} parent=0 // pred_region
    _
  $region5: #{actor_forward.7} parent=0 // pred_fallthru
    _
  // Predicated region
  $region6: #{actor_forward.7} parent=0 // pred_check
    _
  $region7: #{actor_forward.7} parent=0 // pred_check_branch
    %11 = sbr.rel (0) target = $region9
  $region8: #{actor_forward.7} parent=0 // pred_region
    _
  $region9: #{actor_forward.7} parent=0 // pred_fallthru
    _
  // Predicated region
  $region10: #{actor_forward.7} parent=0 // pred_check
    _
  $region11: #{actor_forward.7} parent=0 // pred_check_branch
    %13 = sbr.rel (0) target = $region13
  $region12: #{actor_forward.7} parent=0 // pred_region
    _
  $region13: #{actor_forward.7} parent=0 // pred_fallthru
    _
  %v14 = vld [vmem:[%s0] sm:$0xff]
  %v15 = vld [vmem:[%s0 + $0x8] sm:$0xff]
  %v16 = vld [vmem:[%s0 + $0x10] sm:$0xff]
  %v17 = vld [vmem:[%s0 + $0x18] sm:$0xff]
  %v18 = vld [vmem:[%s0 + $0x20] sm:$0xff]
  %v19 = vld [vmem:[%s0 + $0x28] sm:$0xff]
  %v20 = vld [vmem:[%s0 + $0x30] sm:$0x3]
  %v21 = vld [vmem:[%s0 + $0x38] sm:$0x3]
  %v22 = vld [vmem:[%s0 + $0x40] sm:$0x3]
  %v23 = vld [vmem:[%s1] sm:$0xff]
  %v24 = vld [vmem:[%s1 + $0x8] sm:$0xff]
  %v25 = vld [vmem:[%s1 + $0x10] sm:$0xff]
  %v26 = vld [vmem:[%s1 + $0x18] sm:$0xff]
  %v27 = vld [vmem:[%s1 + $0x20] sm:$0xff]
  %v28 = vld [vmem:[%s1 + $0x28] sm:$0xff]
  %v29 = vld [vmem:[%s1 + $0x30] sm:$0xff]
  %v30 = vld [vmem:[%s1 + $0x38] sm:$0xff]
  %v31 = vld [vmem:[%s1 + $0x40] sm:$0xff]
  %v32 = vld [vmem:[%s1 + $0x48] sm:$0xff]
  %v33 = vld [vmem:[%s1 + $0x50] sm:$0xff]
  %v34 = vld [vmem:[%s1 + $0x58] sm:$0xff]
  %v35 = vld [vmem:[%s1 + $0x60] sm:$0xff]
  %v36 = vld [vmem:[%s1 + $0x68] sm:$0xff]
  %v37 = vld [vmem:[%s1 + $0x70] sm:$0xff]
  %v38 = vld [vmem:[%s1 + $0x78] sm:$0xff]
  %v39 = vld [vmem:[%s1 + $0x80] sm:$0xff]
  %v40 = vld [vmem:[%s1 + $0x88] sm:$0xff]
  %v41 = vld [vmem:[%s1 + $0x90] sm:$0xff]
  %v42 = vld [vmem:[%s1 + $0x98] sm:$0xff]
  %v43 = vld [vmem:[%s1 + $0xa0] sm:$0xff]
  %v44 = vld [vmem:[%s1 + $0xa8] sm:$0xff]
  %v45 = vld [vmem:[%s1 + $0xb0] sm:$0xff]
  %v46 = vld [vmem:[%s1 + $0xb8] sm:$0xff]
  %v47 = vld [vmem:[%s1 + $0xc0] sm:$0xff]
  %v48 = vld [vmem:[%s1 + $0xc8] sm:$0xff]
  %v49 = vld [vmem:[%s1 + $0xd0] sm:$0xff]
  %v50 = vld [vmem:[%s1 + $0xd8] sm:$0xff]
  %v51 = vld [vmem:[%s1 + $0xe0] sm:$0xff]
  %v52 = vld [vmem:[%s1 + $0xe8] sm:$0xff]
  %v53 = vld [vmem:[%s1 + $0xf0] sm:$0xff]
  %v54 = vld [vmem:[%s1 + $0xf8] sm:$0xff]
  %v55 = vld [vmem:[%s1 + $0x100] sm:$0xff]
  %v56 = vld [vmem:[%s1 + $0x108] sm:$0xff]
  %v57 = vld [vmem:[%s1 + $0x110] sm:$0xff]
  %v58 = vld [vmem:[%s1 + $0x118] sm:$0xff]
  %v59 = vld [vmem:[%s2] sm:$0x1]
  %v61 = vperm.slane %v59, 0
  %vm63 = vcmask 261120
  %v65 = vsel %vm63, %v16, 0
  %v68 = vsel %vm63, %v19, 0
  %v71 = vsel %vm63, %v22, 0
  %73 = vmatpush.msra.mxu0 %v38
  %74 = vmatpush.msra.mxu0 %v37
  %75 = vmatpush.msra.mxu0 %v36
  %76 = vmatpush.msra.mxu0 %v35
  %77 = vmatpush.msra.mxu0 %v34
  %78 = vmatpush.msra.mxu0 %v33
  %79 = vmatpush.msra.mxu0 %v32
  %80 = vmatpush.msra.mxu0 %v31
  %81 = vmatpush.msra.mxu0 %v30
  %82 = vmatpush.msra.mxu0 %v29
  %83 = vmatpush.msra.mxu0 %v28
  %84 = vmatpush.msra.mxu0 %v27
  %85 = vmatpush.msra.mxu0 %v26
  %86 = vmatpush.msra.mxu0 %v25
  %87 = vmatpush.msra.mxu0 %v24
  %88 = vmatpush.msra.mxu0 %v23
  %89 = vmatmul.f32.gmra.mxu0 %v14
  %v90 = vpop.f32.mrf.mxu0
  %v91 = vadd.f32 %v61, %v90
  %92 = vmatmul.f32.gmra.mxu0 %v17
  %v93 = vpop.f32.mrf.mxu0
  %v94 = vadd.f32 %v61, %v93
  %95 = vmatmul.f32.gmra.mxu0 %v20
  %v96 = vpop.f32.mrf.mxu0
  %v97 = vadd.f32 %v61, %v96
  %98 = vdwg.mxu0
  %99 = vmatpush.msra.mxu0 %v54
  %100 = vmatpush.msra.mxu0 %v53
  %101 = vmatpush.msra.mxu0 %v52
  %102 = vmatpush.msra.mxu0 %v51
  %103 = vmatpush.msra.mxu0 %v50
  %104 = vmatpush.msra.mxu0 %v49
  %105 = vmatpush.msra.mxu0 %v48
  %106 = vmatpush.msra.mxu0 %v47
  %107 = vmatpush.msra.mxu0 %v46
  %108 = vmatpush.msra.mxu0 %v45
  %109 = vmatpush.msra.mxu0 %v44
  %110 = vmatpush.msra.mxu0 %v43
  %111 = vmatpush.msra.mxu0 %v42
  %112 = vmatpush.msra.mxu0 %v41
  %113 = vmatpush.msra.mxu0 %v40
  %114 = vmatpush.msra.mxu0 %v39
  %115 = vmatmul.f32.gmra.mxu0 %v15
  %v116 = vpop.f32.mrf.mxu0
  %v117 = vadd.f32 %v91, %v116
  %118 = vmatmul.f32.gmra.mxu0 %v18
  %v119 = vpop.f32.mrf.mxu0
  %v120 = vadd.f32 %v94, %v119
  %121 = vmatmul.f32.gmra.mxu0 %v21
  %v122 = vpop.f32.mrf.mxu0
  %v123 = vadd.f32 %v97, %v122
  %124 = vdwg.mxu0
  %125 = vmatpush.msra.mxu0 0.0
  %126 = vmatpush.msra.mxu0 0.0
  %127 = vmatpush.msra.mxu0 0.0
  %128 = vmatpush.msra.mxu0 0.0
  %129 = vmatpush.msra.mxu0 0.0
  %130 = vmatpush.msra.mxu0 0.0
  %131 = vmatpush.msra.mxu0 0.0
  %132 = vmatpush.msra.mxu0 0.0
  %133 = vmatpush.msra.mxu0 0.0
  %134 = vmatpush.msra.mxu0 0.0
  %135 = vmatpush.msra.mxu0 0.0
  %136 = vmatpush.msra.mxu0 0.0
  %137 = vmatpush.msra.mxu0 %v58
  %138 = vmatpush.msra.mxu0 %v57
  %139 = vmatpush.msra.mxu0 %v56
  %140 = vmatpush.msra.mxu0 %v55
  %141 = vmatmul.f32.gmra.mxu0 %v65
  %v142 = vpop.f32.mrf.mxu0
  %v143 = vadd.f32 %v117, %v142
  %144 = vmatmul.f32.gmra.mxu0 %v68
  %v145 = vpop.f32.mrf.mxu0
  %v146 = vadd.f32 %v120, %v145
  %147 = vmatmul.f32.gmra.mxu0 %v71
  %v148 = vpop.f32.mrf.mxu0
  %v149 = vadd.f32 %v123, %v148
  %150 = vdwg.mxu0
  %v151 = vmax.f32 %v143, 0.0
  %v152 = vmax.f32 %v146, 0.0
  %v153 = vmax.f32 %v149, 0.0
  %154 = vst.msk [vmem:[%s3] sm:$0xff] %vm63, %v151
  %155 = vst.msk [vmem:[%s3 + $0x8] sm:$0xff] %vm63, %v152
  %vm156 = vcmask 254976
  %157 = vst.msk [vmem:[%s3 + $0x10] sm:$0x3] %vm156, %v153
  // Predicated region
  $region14: #{actor_forward.7} parent=0 // pred_check
    _
  $region15: #{actor_forward.7} parent=0 // pred_check_branch
    %159 = sbr.rel (0) target = $region17
  $region16: #{actor_forward.7} parent=0 // pred_region
    _
  $region17: #{actor_forward.7} parent=0 // pred_fallthru
    _
  // Predicated region
  $region18: #{actor_forward.7} parent=0 // pred_check
    _
  $region19: #{actor_forward.7} parent=0 // pred_check_branch
    %161 = sbr.rel (0) target = $region21
  $region20: #{actor_forward.7} parent=0 // pred_region
    _
  $region21: #{actor_forward.7} parent=0 // pred_fallthru
    _

// kernel: actor_forward.8
$region0: #{actor_forward.8}
  #allocation0 [shape = 'u32[]', space=smem, size = 0x4, offset = 0x4, fixed_abs, tag = 'smem constant byte address 0x4 - core index']
  #allocation1 [shape = 'u32[72,128]{1,0:T(1,128)}', space=vmem, size = 0x9000, scoped, tag = 'internal scratch']
  %s0 = inlined_call_operand.vmem [shape: f32[2,288], index: 0, kind: input, shape index: {}]
  %s1 = inlined_call_operand.vmem [shape: f32[288,32], index: 1, kind: input, shape index: {}]
  %s2 = inlined_call_operand.vmem [shape: f32[1,32], index: 2, kind: input, shape index: {}]
  %s3 = inlined_call_operand.vmem [shape: f32[2,32], index: 3, kind: output, shape index: {}]
  %s4 = sld [smem:[#allocation0]]
  $region22: #{actor_forward.8} parent=0
    _
  %s6 = ssub.s32 1, %s4
  %s7 = scalar_select 0, %s6, %s4
  // Predicated region
  $region2: #{actor_forward.8} parent=0 // pred_check
    _
  $region3: #{actor_forward.8} parent=0 // pred_check_branch
    %9 = sbr.rel (0) target = $region5
  $region4: #{actor_forward.8} parent=0 // pred_region
    _
  $region5: #{actor_forward.8} parent=0 // pred_fallthru
    _
  // Predicated region
  $region6: #{actor_forward.8} parent=0 // pred_check
    _
  $region7: #{actor_forward.8} parent=0 // pred_check_branch
    %11 = sbr.rel (0) target = $region9
  $region8: #{actor_forward.8} parent=0 // pred_region
    _
  $region9: #{actor_forward.8} parent=0 // pred_fallthru
    _
  // Predicated region
  $region10: #{actor_forward.8} parent=0 // pred_check
    _
  $region11: #{actor_forward.8} parent=0 // pred_check_branch
    %13 = sbr.rel (0) target = $region13
  $region12: #{actor_forward.8} parent=0 // pred_region
    _
  $region13: #{actor_forward.8} parent=0 // pred_fallthru
    _
  %v14 = vld [vmem:[%s0] sm:$0x3f]
  %v15 = vld [vmem:[%s1] sm:$0xff]
  %v16 = vld [vmem:[%s1 + $0x8] sm:$0xff]
  %v17 = vld [vmem:[%s1 + $0x10] sm:$0xff]
  %v18 = vld [vmem:[%s1 + $0x18] sm:$0xff]
  %v19 = vld [vmem:[%s1 + $0x20] sm:$0xff]
  %v20 = vld [vmem:[%s1 + $0x28] sm:$0xff]
  %v21 = vld [vmem:[%s1 + $0x30] sm:$0xff]
  %v22 = vld [vmem:[%s1 + $0x38] sm:$0xff]
  %v23 = vld [vmem:[%s1 + $0x40] sm:$0xff]
  %v24 = vld [vmem:[%s1 + $0x48] sm:$0xff]
  %v25 = vld [vmem:[%s1 + $0x50] sm:$0xff]
  %v26 = vld [vmem:[%s1 + $0x58] sm:$0xff]
  %v27 = vld [vmem:[%s1 + $0x60] sm:$0xff]
  %v28 = vld [vmem:[%s1 + $0x68] sm:$0xff]
  %v29 = vld [vmem:[%s1 + $0x70] sm:$0xff]
  %v30 = vld [vmem:[%s1 + $0x78] sm:$0xff]
  %v31 = vld [vmem:[%s1 + $0x80] sm:$0xff]
  %v32 = vld [vmem:[%s1 + $0x88] sm:$0xff]
  %v33 = vld [vmem:[%s1 + $0x90] sm:$0xff]
  %v34 = vld [vmem:[%s1 + $0x98] sm:$0xff]
  %v35 = vld [vmem:[%s1 + $0xa0] sm:$0xff]
  %v36 = vld [vmem:[%s1 + $0xa8] sm:$0xff]
  %v37 = vld [vmem:[%s1 + $0xb0] sm:$0xff]
  %v38 = vld [vmem:[%s1 + $0xb8] sm:$0xff]
  %v39 = vld [vmem:[%s1 + $0xc0] sm:$0xff]
  %v40 = vld [vmem:[%s1 + $0xc8] sm:$0xff]
  %v41 = vld [vmem:[%s1 + $0xd0] sm:$0xff]
  %v42 = vld [vmem:[%s1 + $0xd8] sm:$0xff]
  %v43 = vld [vmem:[%s1 + $0xe0] sm:$0xff]
  %v44 = vld [vmem:[%s1 + $0xe8] sm:$0xff]
  %v45 = vld [vmem:[%s1 + $0xf0] sm:$0xff]
  %v46 = vld [vmem:[%s1 + $0xf8] sm:$0xff]
  %v47 = vld [vmem:[%s1 + $0x100] sm:$0xff]
  %v48 = vld [vmem:[%s1 + $0x108] sm:$0xff]
  %v49 = vld [vmem:[%s1 + $0x110] sm:$0xff]
  %v50 = vld [vmem:[%s1 + $0x118] sm:$0xff]
  %v51 = vld [vmem:[%s2] sm:$0x1]
  %v53 = vperm.slane %v51, 0
  %56 = vst [vmem:[#allocation1] ss:$4 sm:$0xff] %v14
  %v57 = vld.sshfl [vmem:[#allocation1] sm:$0xff pattern:$0x73625140]
  %v58 = vld.sshfl [vmem:[#allocation1 + $0x8] sm:$0xff pattern:$0x73625140]
  %v59 = vld.sshfl [vmem:[#allocation1 + $0x10] sm:$0xff pattern:$0x73625140]
  %vm62 = vcmask 261120
  %v63 = vsel %vm62, %v59, 0
  %65 = vmatpush.msra.mxu0 %v30
  %66 = vmatpush.msra.mxu0 %v29
  %67 = vmatpush.msra.mxu0 %v28
  %68 = vmatpush.msra.mxu0 %v27
  %69 = vmatpush.msra.mxu0 %v26
  %70 = vmatpush.msra.mxu0 %v25
  %71 = vmatpush.msra.mxu0 %v24
  %72 = vmatpush.msra.mxu0 %v23
  %73 = vmatpush.msra.mxu0 %v22
  %74 = vmatpush.msra.mxu0 %v21
  %75 = vmatpush.msra.mxu0 %v20
  %76 = vmatpush.msra.mxu0 %v19
  %77 = vmatpush.msra.mxu0 %v18
  %78 = vmatpush.msra.mxu0 %v17
  %79 = vmatpush.msra.mxu0 %v16
  %80 = vmatpush.msra.mxu0 %v15
  %81 = vmatmul.f32.gmra.mxu0 %v57
  %v82 = vpop.f32.mrf.mxu0
  %v83 = vadd.f32 %v53, %v82
  %84 = vdwg.mxu0
  %85 = vmatpush.msra.mxu0 %v46
  %86 = vmatpush.msra.mxu0 %v45
  %87 = vmatpush.msra.mxu0 %v44
  %88 = vmatpush.msra.mxu0 %v43
  %89 = vmatpush.msra.mxu0 %v42
  %90 = vmatpush.msra.mxu0 %v41
  %91 = vmatpush.msra.mxu0 %v40
  %92 = vmatpush.msra.mxu0 %v39
  %93 = vmatpush.msra.mxu0 %v38
  %94 = vmatpush.msra.mxu0 %v37
  %95 = vmatpush.msra.mxu0 %v36
  %96 = vmatpush.msra.mxu0 %v35
  %97 = vmatpush.msra.mxu0 %v34
  %98 = vmatpush.msra.mxu0 %v33
  %99 = vmatpush.msra.mxu0 %v32
  %100 = vmatpush.msra.mxu0 %v31
  %101 = vmatmul.f32.gmra.mxu0 %v58
  %v102 = vpop.f32.mrf.mxu0
  %v103 = vadd.f32 %v83, %v102
  %104 = vdwg.mxu0
  %105 = vmatpush.msra.mxu0 0.0
  %106 = vmatpush.msra.mxu0 0.0
  %107 = vmatpush.msra.mxu0 0.0
  %108 = vmatpush.msra.mxu0 0.0
  %109 = vmatpush.msra.mxu0 0.0
  %110 = vmatpush.msra.mxu0 0.0
  %111 = vmatpush.msra.mxu0 0.0
  %112 = vmatpush.msra.mxu0 0.0
  %113 = vmatpush.msra.mxu0 0.0
  %114 = vmatpush.msra.mxu0 0.0
  %115 = vmatpush.msra.mxu0 0.0
  %116 = vmatpush.msra.mxu0 0.0
  %117 = vmatpush.msra.mxu0 %v50
  %118 = vmatpush.msra.mxu0 %v49
  %119 = vmatpush.msra.mxu0 %v48
  %120 = vmatpush.msra.mxu0 %v47
  %121 = vmatmul.f32.gmra.mxu0 %v63
  %v122 = vpop.f32.mrf.mxu0
  %v123 = vadd.f32 %v103, %v122
  %124 = vdwg.mxu0
  %v125 = vmax.f32 %v123, 0.0
  %vm126 = vcmask 254976
  %127 = vst.msk [vmem:[%s3] sm:$0x3] %vm126, %v125
  // Predicated region
  $region14: #{actor_forward.8} parent=0 // pred_check
    _
  $region15: #{actor_forward.8} parent=0 // pred_check_branch
    %129 = sbr.rel (0) target = $region17
  $region16: #{actor_forward.8} parent=0 // pred_region
    _
  $region17: #{actor_forward.8} parent=0 // pred_fallthru
    _
  // Predicated region
  $region18: #{actor_forward.8} parent=0 // pred_check
    _
  $region19: #{actor_forward.8} parent=0 // pred_check_branch
    %131 = sbr.rel (0) target = $region21
  $region20: #{actor_forward.8} parent=0 // pred_region
    _
  $region21: #{actor_forward.8} parent=0 // pred_fallthru
    _

// kernel: actor_forward.9
$region0: #{actor_forward.9}
  #allocation0 [shape = 'u32[]', space=smem, size = 0x4, offset = 0x4, fixed_abs, tag = 'smem constant byte address 0x4 - core index']
  #allocation1 [shape = 'u32[72,128]{1,0:T(1,128)}', space=vmem, size = 0x9000, scoped, tag = 'internal scratch']
  %s0 = inlined_call_operand.vmem [shape: f32[2,32], index: 0, kind: input, shape index: {}]
  %s1 = inlined_call_operand.vmem [shape: f32[32,32], index: 1, kind: input, shape index: {}]
  %s2 = inlined_call_operand.vmem [shape: f32[1,32], index: 2, kind: input, shape index: {}]
  %s3 = inlined_call_operand.vmem [shape: f32[1,32], index: 3, kind: input, shape index: {}]
  %s4 = inlined_call_operand.vmem [shape: f32[1,32], index: 4, kind: input, shape index: {}]
  %s5 = inlined_call_operand.vmem [shape: f32[32,32], index: 5, kind: input, shape index: {}]
  %s6 = inlined_call_operand.vmem [shape: f32[1,32], index: 6, kind: input, shape index: {}]
  %s7 = inlined_call_operand.vmem [shape: f32[32,32], index: 7, kind: input, shape index: {}]
  %s8 = inlined_call_operand.vmem [shape: f32[1,32], index: 8, kind: input, shape index: {}]
  %s9 = inlined_call_operand.vmem [shape: f32[32,12], index: 9, kind: input, shape index: {}]
  %s10 = inlined_call_operand.vmem [shape: f32[1,12], index: 10, kind: input, shape index: {}]
  %s11 = inlined_call_operand.hbm [shape: f32[2,6], index: 11, kind: output, shape index: {0}]
  %s12 = inlined_call_operand.hbm [shape: f32[2,6], index: 12, kind: output, shape index: {1}]
  %13 = xla_tuple %s11, %s12
  %s14 = sld [smem:[#allocation0]]
  $region62: #{actor_forward.9} parent=0
    _
  %s16 = ssub.s32 1, %s14
  %s17 = scalar_select 0, %s16, %s14
  $region1: #{actor_forward.9} parent=0
    #allocation2 [shape = 'u8[1024]{0}', space=vmem, size = 0x400, scoped, tag = 'output window, operand 0, single buffered']
    #allocation3 [shape = 's32[1]{0}', space=sflag, size = 0x4, scoped, tag = 'scoped memory for actor_forward.9']
    #allocation4 [shape = 'u8[1024]{0}', space=vmem, size = 0x400, scoped, tag = 'output window, operand 1, single buffered']
    #allocation5 [shape = 's32[1]{0}', space=sflag, size = 0x4, scoped, tag = 'scoped memory for actor_forward.9']
    %18 = vsyncpa [#allocation3], 0
    %19 = vsyncpa [#allocation5], 0
    // Predicated region
    $region2: #{actor_forward.9} parent=1 // pred_check
      _
    $region3: #{actor_forward.9} parent=1 // pred_check_branch
      %21 = sbr.rel (0) target = $region5
    $region4: #{actor_forward.9} parent=1 // pred_region
      _
    $region5: #{actor_forward.9} parent=1 // pred_fallthru
      _
    // Predicated region
    $region6: #{actor_forward.9} parent=1 // pred_check
      _
    $region7: #{actor_forward.9} parent=1 // pred_check_branch
      %23 = sbr.rel (0) target = $region9
    $region8: #{actor_forward.9} parent=1 // pred_region
      _
    $region9: #{actor_forward.9} parent=1 // pred_fallthru
      _
    // Predicated region
    $region10: #{actor_forward.9} parent=1 // pred_check
      _
    $region11: #{actor_forward.9} parent=1 // pred_check_branch
      %25 = sbr.rel (0) target = $region13
    $region12: #{actor_forward.9} parent=1 // pred_region
      _
    $region13: #{actor_forward.9} parent=1 // pred_fallthru
      _
    // Predicated region
    $region14: #{actor_forward.9} parent=1 // pred_check
      _
    $region15: #{actor_forward.9} parent=1 // pred_check_branch
      %27 = sbr.rel (0) target = $region17
    $region16: #{actor_forward.9} parent=1 // pred_region
      _
    $region17: #{actor_forward.9} parent=1 // pred_fallthru
      _
    // Predicated region
    $region18: #{actor_forward.9} parent=1 // pred_check
      _
    $region19: #{actor_forward.9} parent=1 // pred_check_branch
      %29 = sbr.rel (0) target = $region21
    $region20: #{actor_forward.9} parent=1 // pred_region
      _
    $region21: #{actor_forward.9} parent=1 // pred_fallthru
      _
    // Predicated region
    $region22: #{actor_forward.9} parent=1 // pred_check
      _
    $region23: #{actor_forward.9} parent=1 // pred_check_branch
      %31 = sbr.rel (0) target = $region25
    $region24: #{actor_forward.9} parent=1 // pred_region
      _
    $region25: #{actor_forward.9} parent=1 // pred_fallthru
      _
    // Predicated region
    $region26: #{actor_forward.9} parent=1 // pred_check
      _
    $region27: #{actor_forward.9} parent=1 // pred_check_branch
      %33 = sbr.rel (0) target = $region29
    $region28: #{actor_forward.9} parent=1 // pred_region
      _
    $region29: #{actor_forward.9} parent=1 // pred_fallthru
      _
    // Predicated region
    $region30: #{actor_forward.9} parent=1 // pred_check
      _
    $region31: #{actor_forward.9} parent=1 // pred_check_branch
      %35 = sbr.rel (0) target = $region33
    $region32: #{actor_forward.9} parent=1 // pred_region
      _
    $region33: #{actor_forward.9} parent=1 // pred_fallthru
      _
    // Predicated region
    $region34: #{actor_forward.9} parent=1 // pred_check
      _
    $region35: #{actor_forward.9} parent=1 // pred_check_branch
      %37 = sbr.rel (0) target = $region37
    $region36: #{actor_forward.9} parent=1 // pred_region
      _
    $region37: #{actor_forward.9} parent=1 // pred_fallthru
      _
    // Predicated region
    $region38: #{actor_forward.9} parent=1 // pred_check
      _
    $region39: #{actor_forward.9} parent=1 // pred_check_branch
      %39 = sbr.rel (0) target = $region41
    $region40: #{actor_forward.9} parent=1 // pred_region
      _
    $region41: #{actor_forward.9} parent=1 // pred_fallthru
      _
    // Predicated region
    $region42: #{actor_forward.9} parent=1 // pred_check
      _
    $region43: #{actor_forward.9} parent=1 // pred_check_branch
      %41 = sbr.rel (0) target = $region45
    $region44: #{actor_forward.9} parent=1 // pred_region
      _
    $region45: #{actor_forward.9} parent=1 // pred_fallthru
      _
    %v42 = vld [vmem:[%s0] sm:$0x3]
    %v43 = vld [vmem:[%s1] sm:$0xff]
    %v44 = vld [vmem:[%s1 + $0x8] sm:$0xff]
    %v45 = vld [vmem:[%s1 + $0x10] sm:$0xff]
    %v46 = vld [vmem:[%s1 + $0x18] sm:$0xff]
    %v47 = vld [vmem:[%s2] sm:$0x1]
    %v49 = vperm.slane %v47, 0
    %vm51 = vcmask 261120
    %v53 = vsel %vm51, %v42, 0
    %55 = vmatpush.msra.mxu0 0.0
    %56 = vmatpush.msra.mxu0 0.0
    %57 = vmatpush.msra.mxu0 0.0
    %58 = vmatpush.msra.mxu0 0.0
    %59 = vmatpush.msra.mxu0 0.0
    %60 = vmatpush.msra.mxu0 0.0
    %61 = vmatpush.msra.mxu0 0.0
    %62 = vmatpush.msra.mxu0 0.0
    %63 = vmatpush.msra.mxu0 0.0
    %64 = vmatpush.msra.mxu0 0.0
    %65 = vmatpush.msra.mxu0 0.0
    %66 = vmatpush.msra.mxu0 0.0
    %67 = vmatpush.msra.mxu0 %v46
    %68 = vmatpush.msra.mxu0 %v45
    %69 = vmatpush.msra.mxu0 %v44
    %70 = vmatpush.msra.mxu0 %v43
    %71 = vmatmul.f32.gmra.mxu0 %v53
    %v72 = vpop.f32.mrf.mxu0
    %v73 = vadd.f32 %v49, %v72
    %74 = vdwg.mxu0
    %vm75 = vcmask 254976
    %v76 = vsel %vm75, %v73, 0.0
    %77 = vadd.xlane.f32.xlu0 %v76
    %v78 = vpop.xlane.xlu0 %77
    %v79 = vrcp.pop 32.0
    %v80 = vmul.f32 32.0, %v79
    %v81 = vsub.f32 1.0, %v80
    %v82 = vmul.f32 %v79, %v81
    %v83 = vadd.f32 %v79, %v82
    %vm84 = vweird.f32 %v79
    %v85 = vsel %vm84, %v79, %v83
    %v86 = vmul.f32 %v78, %v85
    %v87 = vsub.f32 %v73, %v86
    %v88 = vmul.f32 %v87, %v87
    %v89 = vsel %vm75, %v88, 0.0
    %90 = vadd.xlane.f32.xlu0 %v89
    %v91 = vpop.xlane.xlu0 %90
    %v92 = vmul.f32 %v91, %v85
    %v93 = vadd.f32 %v92, 1e-05
    %v94 = vrsqrt.pop %v93
    %v95 = vmul.f32 %v94, %v93
    %v96 = vmul.f32 %v95, %v94
    %v97 = vmul.f32 0.5, %v96
    %v98 = vsub.f32 1.5, %v97
    %v99 = vmul.f32 %v94, %v98
    %vm100 = vweird.f32 %v93
    %vm101 = vweird.f32 %v94
    %vm102 = vmor %vm100, %vm101
    %v103 = vsel %vm102, %v94, %v99
    %v104 = vmul.f32 %v87, %v103
    %v105 = vld [vmem:[%s3] sm:$0x1]
    %v107 = vperm.slane %v105, 0
    %v109 = vmul.f32 %v104, %v107
    %v110 = vld [vmem:[%s4] sm:$0x1]
    %v112 = vperm.slane %v110, 0
    %v114 = vadd.f32 %v109, %v112
    %v115 = vtanh.pop %v114
    %v116 = vld [vmem:[%s5] sm:$0xff]
    %v117 = vld [vmem:[%s5 + $0x8] sm:$0xff]
    %v118 = vld [vmem:[%s5 + $0x10] sm:$0xff]
    %v119 = vld [vmem:[%s5 + $0x18] sm:$0xff]
    %v120 = vld [vmem:[%s6] sm:$0x1]
    %v122 = vperm.slane %v120, 0
    %v125 = vsel %vm51, %v115, 0
    %127 = vmatpush.msra.mxu0 0.0
    %128 = vmatpush.msra.mxu0 0.0
    %129 = vmatpush.msra.mxu0 0.0
    %130 = vmatpush.msra.mxu0 0.0
    %131 = vmatpush.msra.mxu0 0.0
    %132 = vmatpush.msra.mxu0 0.0
    %133 = vmatpush.msra.mxu0 0.0
    %134 = vmatpush.msra.mxu0 0.0
    %135 = vmatpush.msra.mxu0 0.0
    %136 = vmatpush.msra.mxu0 0.0
    %137 = vmatpush.msra.mxu0 0.0
    %138 = vmatpush.msra.mxu0 0.0
    %139 = vmatpush.msra.mxu0 %v119
    %140 = vmatpush.msra.mxu0 %v118
    %141 = vmatpush.msra.mxu0 %v117
    %142 = vmatpush.msra.mxu0 %v116
    %143 = vmatmul.f32.gmra.mxu0 %v125
    %v144 = vpop.f32.mrf.mxu0
    %v145 = vadd.f32 %v122, %v144
    %146 = vdwg.mxu0
    %v147 = vmax.f32 %v145, 0.0
    %v148 = vld [vmem:[%s7] sm:$0xff]
    %v149 = vld [vmem:[%s7 + $0x8] sm:$0xff]
    %v150 = vld [vmem:[%s7 + $0x10] sm:$0xff]
    %v151 = vld [vmem:[%s7 + $0x18] sm:$0xff]
    %v152 = vld [vmem:[%s8] sm:$0x1]
    %v154 = vperm.slane %v152, 0
    %v157 = vsel %vm51, %v147, 0
    %159 = vmatpush.msra.mxu0 0.0
    %160 = vmatpush.msra.mxu0 0.0
    %161 = vmatpush.msra.mxu0 0.0
    %162 = vmatpush.msra.mxu0 0.0
    %163 = vmatpush.msra.mxu0 0.0
    %164 = vmatpush.msra.mxu0 0.0
    %165 = vmatpush.msra.mxu0 0.0
    %166 = vmatpush.msra.mxu0 0.0
    %167 = vmatpush.msra.mxu0 0.0
    %168 = vmatpush.msra.mxu0 0.0
    %169 = vmatpush.msra.mxu0 0.0
    %170 = vmatpush.msra.mxu0 0.0
    %171 = vmatpush.msra.mxu0 %v151
    %172 = vmatpush.msra.mxu0 %v150
    %173 = vmatpush.msra.mxu0 %v149
    %174 = vmatpush.msra.mxu0 %v148
    %175 = vmatmul.f32.gmra.mxu0 %v157
    %v176 = vpop.f32.mrf.mxu0
    %v177 = vadd.f32 %v154, %v176
    %178 = vdwg.mxu0
    %v179 = vmax.f32 %v177, 0.0
    %v180 = vld [vmem:[%s9] sm:$0xff]
    %v181 = vld [vmem:[%s9 + $0x8] sm:$0xff]
    %v182 = vld [vmem:[%s9 + $0x10] sm:$0xff]
    %v183 = vld [vmem:[%s9 + $0x18] sm:$0xff]
    %v184 = vld [vmem:[%s10] sm:$0x1]
    %v186 = vperm.slane %v184, 0
    %v189 = vsel %vm51, %v179, 0
    %191 = vmatpush.msra.mxu0 0.0
    %192 = vmatpush.msra.mxu0 0.0
    %193 = vmatpush.msra.mxu0 0.0
    %194 = vmatpush.msra.mxu0 0.0
    %195 = vmatpush.msra.mxu0 0.0
    %196 = vmatpush.msra.mxu0 0.0
    %197 = vmatpush.msra.mxu0 0.0
    %198 = vmatpush.msra.mxu0 0.0
    %199 = vmatpush.msra.mxu0 0.0
    %200 = vmatpush.msra.mxu0 0.0
    %201 = vmatpush.msra.mxu0 0.0
    %202 = vmatpush.msra.mxu0 0.0
    %203 = vmatpush.msra.mxu0 %v183
    %204 = vmatpush.msra.mxu0 %v182
    %205 = vmatpush.msra.mxu0 %v181
    %206 = vmatpush.msra.mxu0 %v180
    %207 = vmatmul.f32.gmra.mxu0 %v189
    %v208 = vpop.f32.mrf.mxu0
    %v209 = vadd.f32 %v186, %v208
    %210 = vdwg.mxu0
    %v211 = vtanh.pop %v209
    %v212 = vadd.f32 %v211, 1.0
    %v213 = vmul.f32 %v212, 6.0
    %v214 = vadd.f32 %v213, -10.0
    %vm215 = vcmask 41984
    %216 = vst.msk [vmem:[#allocation2] sm:$0x3] %vm215, %v209
    %v217 = vmul.f32 %v214, 1.442695
    %v218 = vpow.pop %v217
    %220 = vrot.lane.b32.xlu0 %v218, 122
    %v221 = vpop.permute.xlu0 %220
    %223 = vst.msk [vmem:[#allocation4] sm:$0x3] %vm215, %v221
    // Predicated region
    $region46: #{actor_forward.9} parent=1 // pred_check
      _
    $region47: #{actor_forward.9} parent=1 // pred_check_branch
      %225 = sbr.rel (0) target = $region49
    $region48: #{actor_forward.9} parent=1 // pred_region
      %227 = vsyncadd [#allocation3], 0
      %s229 = sshll.u32 [#allocation2], 4
      %s230 = int_to_ptr.vmem [resolvable:$true] %s229
      %s231 = sshll.u32 %s11, 4
      %s232 = int_to_ptr.hbm [resolvable:$true] %s231
      %234 = dma.vmem_to_hbm [thread:$0]  %s230, 32, %s232, [#allocation3]
    $region49: #{actor_forward.9} parent=1 // pred_fallthru
      _
    // Predicated region
    $region50: #{actor_forward.9} parent=1 // pred_check
      _
    $region51: #{actor_forward.9} parent=1 // pred_check_branch
      %236 = sbr.rel (0) target = $region53
    $region52: #{actor_forward.9} parent=1 // pred_region
      %238 = vsyncadd [#allocation5], 0
      %s240 = sshll.u32 [#allocation4], 4
      %s241 = int_to_ptr.vmem [resolvable:$true] %s240
      %s242 = sshll.u32 %s12, 4
      %s243 = int_to_ptr.hbm [resolvable:$true] %s242
      %245 = dma.vmem_to_hbm [thread:$0]  %s241, 32, %s243, [#allocation5]
    $region53: #{actor_forward.9} parent=1 // pred_fallthru
      _
    // Predicated region
    $region54: #{actor_forward.9} parent=1 // pred_check
      _
    $region55: #{actor_forward.9} parent=1 // pred_check_branch
      %247 = sbr.rel (0) target = $region57
    $region56: #{actor_forward.9} parent=1 // pred_region
      %249 = dma.done [#allocation3], 32
    $region57: #{actor_forward.9} parent=1 // pred_fallthru
      _
    // Predicated region
    $region58: #{actor_forward.9} parent=1 // pred_check
      _
    $region59: #{actor_forward.9} parent=1 // pred_check_branch
      %251 = sbr.rel (0) target = $region61
    $region60: #{actor_forward.9} parent=1 // pred_region
      %253 = dma.done [#allocation5], 32
    $region61: #{actor_forward.9} parent=1 // pred_fallthru
      _
    %254 = vsyncpa [#allocation3], 1
    %255 = vsyncpa [#allocation5], 1

</llo_original>
